<compile_context>
chip_gen: v7x
topology: tpu7x:2x2x1
jax: 0.10.0
libtpu: 0.0.40
codegen_flags: <defaults>
</compile_context>

<pallas_src>
import math
import functools

import jax
import jax.numpy as jnp
from jax.experimental import pallas as pl
from jax.experimental.pallas import tpu as pltpu


def _cnre_kernel(thetaT_ref, xT_ref, w1t_th_ref, w1t_x_ref, b1_ref,
                 w2t_ref, b2_ref, w3_ref, b3_ref, out_ref, *, K, N, gamma):
    j = pl.program_id(0)
    TN = xT_ref.shape[-1]
    S = 2 * K

    # Lane-dense validity mask for the (possibly padded) last batch tile.
    col = jax.lax.broadcasted_iota(jnp.int32, (1, TN), 1) + j * TN
    valid = (col < N).astype(jnp.float32)                                 # (1, TN)

    # Layer-1 x-contribution (+ bias): computed once, shared by all 2K sets.
    hxb = jnp.dot(w1t_x_ref[...], xT_ref[...],
                  preferred_element_type=jnp.float32) + b1_ref[...]       # (H, TN) f32

    # Layer-1 theta contribution for ALL 2K sets in a single MXU call.
    th_part = jnp.dot(w1t_th_ref[...], thetaT_ref[0],
                      preferred_element_type=jnp.float32)                 # (H, S*TN)

    pre1 = th_part + jnp.concatenate([hxb] * S, axis=1)                   # (H, S*TN)
    h1 = jnp.maximum(pre1, 0.0).astype(jnp.bfloat16)

    # Layer 2: one matmul over the whole (H, S*TN) slab.
    pre2 = jnp.dot(w2t_ref[...], h1,
                   preferred_element_type=jnp.float32) + b2_ref[...]      # (H, S*TN)
    h2 = jnp.maximum(pre2, 0.0)

    # Final (H -> 1) head as VPU multiply + sublane reduction.
    logits = jnp.sum(h2 * w3_ref[...], axis=0, keepdims=True) + b3_ref[...]  # (1, S*TN)

    # Per-(set) logit rows, sliced at TN-aligned (multiple-of-128) lane offsets.
    rows = [logits[:, sk * TN:(sk + 1) * TN] for sk in range(S)]

    shift = math.log(gamma / K)

    def lse(rs):  # logsumexp over the K set members; all operands (1, TN) f32
        m = rs[0]
        for r in rs[1:]:
            m = jnp.maximum(m, r)
        s = jnp.exp(rs[0] - m)
        for r in rs[1:]:
            s = s + jnp.exp(r - m)
        return m + jnp.log(s)

    log_r = lse(rows[:K]) + shift          # d(Theta_i, x_i) logit,  (1, TN)
    log_r_p = lse(rows[K:]) + shift        # d(Theta'_i, x_i) logit, (1, TN)

    def nlog_sigmoid(v):                   # -log(sigmoid(v)), numerically stable
        return jnp.log1p(jnp.exp(-jnp.abs(v))) - jnp.minimum(v, 0.0)

    # Two direct lane-dense stores (no concat / extra VMEM copy).
    out_ref[0, 0:1, :] = nlog_sigmoid(log_r) * valid
    out_ref[0, 1:2, :] = nlog_sigmoid(-log_r_p) * valid


def cnre_loss_pallas(theta, x, params, *, K, gamma, block_n=512):
    """CNRE loss with a 3-layer MLP log-ratio estimator; hot path in Pallas."""
    w1, b1, w2, b2, w3, b3 = params
    f32, bf16 = jnp.float32, jnp.bfloat16
    theta = theta.astype(f32)
    x = x.astype(f32)
    N, D = theta.shape
    L = x.shape[1]
    H = w1.shape[1]
    S = 2 * K

    # ---- layout-friendly zero padding (numerically exact) ------------------
    pad8 = lambda n: ((n + 7) // 8) * 8
    D_pad, L_pad, H_pad = pad8(D), pad8(L), pad8(H)
    TN = min(block_n, ((N + 127) // 128) * 128)   # lane tile; >=128, <=block_n
    N_pad = ((N + TN - 1) // TN) * TN
    grid_n = N_pad // TN   # on v7x prefer block_n that keeps grid_n a multiple of 2

    # ---- weights: bf16 matmul operands, f32 bias / head --------------------
    w1 = w1.astype(f32)
    w1t_th = jnp.zeros((H_pad, D_pad), bf16).at[:H, :D].set(w1[:D].T.astype(bf16))
    w1t_x = jnp.zeros((H_pad, L_pad), bf16).at[:H, :L].set(w1[D:].T.astype(bf16))
    b1c = jnp.zeros((H_pad, 1), f32).at[:H, 0].set(b1.astype(f32).reshape(H))
    w2t = jnp.zeros((H_pad, H_pad), bf16).at[:H, :H].set(w2.astype(bf16).T)
    b2c = jnp.zeros((H_pad, 1), f32).at[:H, 0].set(b2.astype(f32).reshape(H))
    w3c = jnp.zeros((H_pad, 1), f32).at[:H, 0].set(w3.astype(f32).reshape(H))
    b3c = jnp.asarray(b3, f32).reshape(1, 1)

    # ---- contrastive sets: gather only theta (tiny D); x passed once -------
    # set 0, member k uses theta[(i + k) % N]; set 1 uses theta[(i + k - K) % N]
    offs = jnp.asarray([k - s * K for s in range(2) for k in range(K)], jnp.int32)
    idx = (jnp.arange(N_pad, dtype=jnp.int32)[None, :] + offs[:, None]) % N   # (S, N_pad)
    theta_g = theta[idx].astype(bf16)                                          # (S, N_pad, D)
    # Per-tile slab: for grid block j, the 2K sets' TN-wide column ranges are
    # contiguous on the lane axis -> one (D_pad, S*TN) RHS per grid step.
    theta_g = theta_g.reshape(S, grid_n, TN, D)
    theta_g = jnp.transpose(theta_g, (1, 3, 0, 2)).reshape(grid_n, D, S * TN)
    thetaT = jnp.zeros((grid_n, D_pad, S * TN), bf16).at[:, :D, :].set(theta_g)

    xT = jnp.zeros((L_pad, N_pad), bf16).at[:L, :N].set(x.T.astype(bf16))

    kernel = functools.partial(_cnre_kernel, K=K, N=N, gamma=float(gamma))

    parts = pl.pallas_call(
        kernel,
        out_shape=jax.ShapeDtypeStruct((grid_n, 2, TN), f32),
        grid=(grid_n,),
        in_specs=[
            pl.BlockSpec((1, D_pad, S * TN), lambda j: (j, 0, 0)),  # theta set slab
            pl.BlockSpec((L_pad, TN), lambda j: (0, j)),            # x^T
            pl.BlockSpec((H_pad, D_pad), lambda j: (0, 0)),         # W1 theta-rows^T
            pl.BlockSpec((H_pad, L_pad), lambda j: (0, 0)),         # W1 x-rows^T
            pl.BlockSpec((H_pad, 1), lambda j: (0, 0)),             # b1
            pl.BlockSpec((H_pad, H_pad), lambda j: (0, 0)),         # W2^T
            pl.BlockSpec((H_pad, 1), lambda j: (0, 0)),             # b2
            pl.BlockSpec((H_pad, 1), lambda j: (0, 0)),             # w3
            pl.BlockSpec((1, 1), lambda j: (0, 0)),                 # b3
        ],
        out_specs=pl.BlockSpec((1, 2, TN), lambda j: (j, 0, 0)),
        compiler_params=pltpu.CompilerParams(
            dimension_semantics=("parallel",)),
    )(thetaT, xT, w1t_th, w1t_x, b1c, w2t, b2c, w3c, b3c)

    s = jnp.sum(parts, axis=(0, 2))        # (2,) = [sum nll1, sum nll0]
    return (gamma * s[0] + s[1]) / ((gamma + 1.0) * N)


def cnre_loss_reference(theta, x, params, *, K, gamma):
    """Pure-JAX reference mirroring the PyTorch module (same MLP estimator)."""
    w1, b1, w2, b2, w3, b3 = params
    N, D = theta.shape
    L = x.shape[1]
    hi = jax.lax.Precision.HIGHEST
    idx = (jnp.arange(N)[None, :] + jnp.arange(K)[:, None]) % N   # (K, N)
    Theta = theta[idx]                                            # (K, N, D)
    Theta_prime = jnp.roll(Theta, K, axis=1)
    big = jnp.stack([Theta, Theta_prime], axis=0)                 # (2, K, N, D)
    x_b = jnp.broadcast_to(x[None, None], (2, K, N, L))
    z = jnp.concatenate([big, x_b], axis=-1).reshape(2 * K * N, D + L)
    h = jax.nn.relu(jnp.dot(z, w1, precision=hi) + b1)
    h = jax.nn.relu(jnp.dot(h, w2, precision=hi) + b2)
    logits = (jnp.dot(h, w3, precision=hi) + b3).reshape(2, K, N)
    lse = jax.scipy.special.logsumexp(logits, axis=1) + math.log(gamma / K)
    l1 = -jnp.mean(jax.nn.log_sigmoid(lse[0]))
    l0 = -jnp.mean(jax.nn.log_sigmoid(-lse[1]))
    return (gamma * l1 + l0) / (gamma + 1.0)


if __name__ == "__main__":
    # theta: (N, D), x: (N, L) — same layout as the PyTorch module.
    N, D, L = 200, 4, 16        # N not a multiple of 128 -> exercises masking
    K, gamma = 3, 2.0
    H = 32                      # hidden width of the MLP log-ratio estimator

    key = jax.random.PRNGKey(0)
    ks = jax.random.split(key, 8)
    theta = jax.random.normal(ks[0], (N, D), dtype=jnp.float32)
    x = jax.random.normal(ks[1], (N, L), dtype=jnp.float32)

    F = D + L
    w1 = jax.random.normal(ks[2], (F, H), dtype=jnp.float32) / math.sqrt(F)
    b1 = 0.1 * jax.random.normal(ks[3], (1, H), dtype=jnp.float32)
    w2 = jax.random.normal(ks[4], (H, H), dtype=jnp.float32) / math.sqrt(H)
    b2 = 0.1 * jax.random.normal(ks[5], (1, H), dtype=jnp.float32)
    w3 = jax.random.normal(ks[6], (H, 1), dtype=jnp.float32) / math.sqrt(H)
    b3 = 0.1 * jax.random.normal(ks[7], (1, 1), dtype=jnp.float32)
    params = (w1, b1, w2, b2, w3, b3)

    loss = cnre_loss_pallas(theta, x, params, K=K, gamma=gamma)
    loss = jax.block_until_ready(loss)

    # Kernel runs bf16 matmuls (f32 accum) vs. an f32 HIGHEST reference, so the
    # tolerance is loosened accordingly.
    ref = cnre_loss_reference(theta, x, params, K=K, gamma=gamma)
    assert jnp.allclose(loss, ref, rtol=2e-2, atol=2e-2), (float(loss), float(ref))

    print("KERNEL_OK")
</pallas_src>

<mosaic_0001>
module attributes {stable_mosaic.version = 11 : i64} {
  func.func @_cnre_kernel(%arg0: i32, %arg1: memref<1x8x1536xbf16, #tpu.memory_space<vmem>>, %arg2: memref<16x256xbf16, #tpu.memory_space<vmem>>, %arg3: memref<32x8xbf16, #tpu.memory_space<vmem>>, %arg4: memref<32x16xbf16, #tpu.memory_space<vmem>>, %arg5: memref<32x1xf32, #tpu.memory_space<vmem>>, %arg6: memref<32x32xbf16, #tpu.memory_space<vmem>>, %arg7: memref<32x1xf32, #tpu.memory_space<vmem>>, %arg8: memref<32x1xf32, #tpu.memory_space<vmem>>, %arg9: memref<1x1xf32, #tpu.memory_space<vmem>>, %arg10: memref<1x2x256xf32, #tpu.memory_space<vmem>>) attributes {dimension_semantics = [#tpu.dimension_semantics<parallel>], iteration_bounds = array<i64: 1>, scalar_prefetch = 0 : i64, scratch_operands = 0 : i64, tpu.core_type = #tpu.core_type<tc>, window_params = [{transform_indices = @transform_0, window_bounds = array<i64: 1, 8, 1536>}, {transform_indices = @transform_1, window_bounds = array<i64: 16, 256>}, {pipeline_mode = #tpu.pipeline_mode<synchronous>, transform_indices = @transform_2, window_bounds = array<i64: 32, 8>}, {pipeline_mode = #tpu.pipeline_mode<synchronous>, transform_indices = @transform_3, window_bounds = array<i64: 32, 16>}, {pipeline_mode = #tpu.pipeline_mode<synchronous>, transform_indices = @transform_4, window_bounds = array<i64: 32, 1>}, {pipeline_mode = #tpu.pipeline_mode<synchronous>, transform_indices = @transform_5, window_bounds = array<i64: 32, 32>}, {pipeline_mode = #tpu.pipeline_mode<synchronous>, transform_indices = @transform_6, window_bounds = array<i64: 32, 1>}, {pipeline_mode = #tpu.pipeline_mode<synchronous>, transform_indices = @transform_7, window_bounds = array<i64: 32, 1>}, {pipeline_mode = #tpu.pipeline_mode<synchronous>, transform_indices = @transform_8, window_bounds = array<i64: 1, 1>}, {transform_indices = @transform_9, window_bounds = array<i64: 1, 2, 256>}]} {
    %0 = tpu.iota {dimensions = array<i32: 1>} : vector<1x256xi32>
    %c256_i32 = arith.constant 256 : i32
    %1 = arith.muli %arg0, %c256_i32 : i32
    %2 = vector.broadcast %1 : i32 to vector<1x256xi32>
    %3 = arith.addi %0, %2 : vector<1x256xi32>
    %c200_i32 = arith.constant 200 : i32
    %4 = vector.broadcast %c200_i32 : i32 to vector<1x256xi32>
    %5 = arith.cmpi slt, %3, %4 : vector<1x256xi32>
    %6 = arith.extui %5 : vector<1x256xi1> to vector<1x256xi32>
    %7 = arith.sitofp %6 : vector<1x256xi32> to vector<1x256xf32>
    %c0 = arith.constant 0 : index
    %c0_0 = arith.constant 0 : index
    %8 = vector.load %arg4[%c0, %c0_0] : memref<32x16xbf16, #tpu.memory_space<vmem>>, vector<32x16xbf16>
    %c0_1 = arith.constant 0 : index
    %c0_2 = arith.constant 0 : index
    %9 = vector.load %arg2[%c0_1, %c0_2] : memref<16x256xbf16, #tpu.memory_space<vmem>>, vector<16x256xbf16>
    %cst = arith.constant dense<0.000000e+00> : vector<32x256xf32>
    %10 = tpu.matmul %8, %9, %cst {dimension_numbers = #tpu.dot_dimension_numbers<[1], [0], [0], [1], [0, 0, 1, 1], [], []>} : vector<32x16xbf16>, vector<16x256xbf16>, vector<32x256xf32> -> vector<32x256xf32>
    %c0_3 = arith.constant 0 : index
    %c0_4 = arith.constant 0 : index
    %11 = vector.load %arg5[%c0_3, %c0_4] : memref<32x1xf32, #tpu.memory_space<vmem>>, vector<32x1xf32>
    %12 = vector.broadcast %11 : vector<32x1xf32> to vector<32x256xf32>
    %13 = arith.addf %10, %12 : vector<32x256xf32>
    %c0_5 = arith.constant 0 : index
    %c0_6 = arith.constant 0 : index
    %14 = vector.load %arg3[%c0_5, %c0_6] : memref<32x8xbf16, #tpu.memory_space<vmem>>, vector<32x8xbf16>
    %c0_7 = arith.constant 0 : index
    %c0_8 = arith.constant 0 : index
    %c0_9 = arith.constant 0 : index
    %15 = vector.load %arg1[%c0_7, %c0_8, %c0_9] : memref<1x8x1536xbf16, #tpu.memory_space<vmem>>, vector<1x8x1536xbf16>
    %16 = vector.shape_cast %15 : vector<1x8x1536xbf16> to vector<8x1536xbf16>
    %cst_10 = arith.constant dense<0.000000e+00> : vector<32x1536xf32>
    %17 = tpu.matmul %14, %16, %cst_10 {dimension_numbers = #tpu.dot_dimension_numbers<[1], [0], [0], [1], [0, 0, 1, 1], [], []>} : vector<32x8xbf16>, vector<8x1536xbf16>, vector<32x1536xf32> -> vector<32x1536xf32>
    %18 = tpu.concatenate %13, %13, %13, %13, %13, %13 in 1 : vector<32x256xf32>, vector<32x256xf32>, vector<32x256xf32>, vector<32x256xf32>, vector<32x256xf32>, vector<32x256xf32> -> vector<32x1536xf32>
    %19 = arith.addf %17, %18 : vector<32x1536xf32>
    %cst_11 = arith.constant 0.000000e+00 : f32
    %20 = vector.broadcast %cst_11 : f32 to vector<32x1536xf32>
    %21 = arith.maximumf %19, %20 : vector<32x1536xf32>
    %22 = arith.truncf %21 : vector<32x1536xf32> to vector<32x1536xbf16>
    %c0_12 = arith.constant 0 : index
    %c0_13 = arith.constant 0 : index
    %23 = vector.load %arg6[%c0_12, %c0_13] : memref<32x32xbf16, #tpu.memory_space<vmem>>, vector<32x32xbf16>
    %cst_14 = arith.constant dense<0.000000e+00> : vector<32x1536xf32>
    %24 = tpu.matmul %23, %22, %cst_14 {dimension_numbers = #tpu.dot_dimension_numbers<[1], [0], [0], [1], [0, 0, 1, 1], [], []>} : vector<32x32xbf16>, vector<32x1536xbf16>, vector<32x1536xf32> -> vector<32x1536xf32>
    %c0_15 = arith.constant 0 : index
    %c0_16 = arith.constant 0 : index
    %25 = vector.load %arg7[%c0_15, %c0_16] : memref<32x1xf32, #tpu.memory_space<vmem>>, vector<32x1xf32>
    %26 = vector.broadcast %25 : vector<32x1xf32> to vector<32x1536xf32>
    %27 = arith.addf %24, %26 : vector<32x1536xf32>
    %cst_17 = arith.constant 0.000000e+00 : f32
    %28 = vector.broadcast %cst_17 : f32 to vector<32x1536xf32>
    %29 = arith.maximumf %27, %28 : vector<32x1536xf32>
    %c0_18 = arith.constant 0 : index
    %c0_19 = arith.constant 0 : index
    %30 = vector.load %arg8[%c0_18, %c0_19] : memref<32x1xf32, #tpu.memory_space<vmem>>, vector<32x1xf32>
    %31 = vector.broadcast %30 : vector<32x1xf32> to vector<32x1536xf32>
    %32 = arith.mulf %29, %31 : vector<32x1536xf32>
    %cst_20 = arith.constant dense<0.000000e+00> : vector<1536xf32>
    %33 = vector.multi_reduction <add>, %32, %cst_20 [0] : vector<32x1536xf32> to vector<1536xf32>
    %34 = vector.shape_cast %33 : vector<1536xf32> to vector<1x1536xf32>
    %c0_21 = arith.constant 0 : index
    %c0_22 = arith.constant 0 : index
    %35 = vector.load %arg9[%c0_21, %c0_22] : memref<1x1xf32, #tpu.memory_space<vmem>>, vector<1x1xf32>
    %36 = vector.broadcast %35 : vector<1x1xf32> to vector<1x1536xf32>
    %37 = arith.addf %34, %36 : vector<1x1536xf32>
    %38 = vector.extract_strided_slice %37 {offsets = [0, 0], sizes = [1, 256], strides = [1, 1]} : vector<1x1536xf32> to vector<1x256xf32>
    %39 = vector.extract_strided_slice %37 {offsets = [0, 256], sizes = [1, 256], strides = [1, 1]} : vector<1x1536xf32> to vector<1x256xf32>
    %40 = vector.extract_strided_slice %37 {offsets = [0, 512], sizes = [1, 256], strides = [1, 1]} : vector<1x1536xf32> to vector<1x256xf32>
    %41 = vector.extract_strided_slice %37 {offsets = [0, 768], sizes = [1, 256], strides = [1, 1]} : vector<1x1536xf32> to vector<1x256xf32>
    %42 = vector.extract_strided_slice %37 {offsets = [0, 1024], sizes = [1, 256], strides = [1, 1]} : vector<1x1536xf32> to vector<1x256xf32>
    %43 = vector.extract_strided_slice %37 {offsets = [0, 1280], sizes = [1, 256], strides = [1, 1]} : vector<1x1536xf32> to vector<1x256xf32>
    %44 = arith.maximumf %38, %39 : vector<1x256xf32>
    %45 = arith.maximumf %44, %40 : vector<1x256xf32>
    %46 = arith.subf %38, %45 : vector<1x256xf32>
    %47 = math.exp %46 : vector<1x256xf32>
    %48 = arith.subf %39, %45 : vector<1x256xf32>
    %49 = math.exp %48 : vector<1x256xf32>
    %50 = arith.addf %47, %49 : vector<1x256xf32>
    %51 = arith.subf %40, %45 : vector<1x256xf32>
    %52 = math.exp %51 : vector<1x256xf32>
    %53 = arith.addf %50, %52 : vector<1x256xf32>
    %54 = math.log %53 : vector<1x256xf32>
    %55 = arith.addf %45, %54 : vector<1x256xf32>
    %cst_23 = arith.constant -0.405465096 : f32
    %56 = vector.broadcast %cst_23 : f32 to vector<1x256xf32>
    %57 = arith.addf %55, %56 : vector<1x256xf32>
    %58 = arith.maximumf %41, %42 : vector<1x256xf32>
    %59 = arith.maximumf %58, %43 : vector<1x256xf32>
    %60 = arith.subf %41, %59 : vector<1x256xf32>
    %61 = math.exp %60 : vector<1x256xf32>
    %62 = arith.subf %42, %59 : vector<1x256xf32>
    %63 = math.exp %62 : vector<1x256xf32>
    %64 = arith.addf %61, %63 : vector<1x256xf32>
    %65 = arith.subf %43, %59 : vector<1x256xf32>
    %66 = math.exp %65 : vector<1x256xf32>
    %67 = arith.addf %64, %66 : vector<1x256xf32>
    %68 = math.log %67 : vector<1x256xf32>
    %69 = arith.addf %59, %68 : vector<1x256xf32>
    %cst_24 = arith.constant -0.405465096 : f32
    %70 = vector.broadcast %cst_24 : f32 to vector<1x256xf32>
    %71 = arith.addf %69, %70 : vector<1x256xf32>
    %72 = math.absf %57 : vector<1x256xf32>
    %cst_25 = arith.constant 0.000000e+00 : f32
    %73 = vector.broadcast %cst_25 : f32 to vector<1x256xf32>
    %74 = arith.subf %73, %72 : vector<1x256xf32>
    %75 = math.exp %74 : vector<1x256xf32>
    %76 = math.log1p %75 : vector<1x256xf32>
    %cst_26 = arith.constant 0.000000e+00 : f32
    %77 = vector.broadcast %cst_26 : f32 to vector<1x256xf32>
    %78 = arith.minimumf %57, %77 : vector<1x256xf32>
    %79 = arith.subf %76, %78 : vector<1x256xf32>
    %80 = arith.mulf %79, %7 : vector<1x256xf32>
    %c0_27 = arith.constant 0 : index
    %c0_28 = arith.constant 0 : index
    %c0_29 = arith.constant 0 : index
    %81 = vector.load %arg10[%c0_27, %c0_28, %c0_29] : memref<1x2x256xf32, #tpu.memory_space<vmem>>, vector<1x1x256xf32>
    %82 = vector.shape_cast %81 : vector<1x1x256xf32> to vector<1x256xf32>
    %83 = vector.shape_cast %80 : vector<1x256xf32> to vector<1x1x256xf32>
    tpu.vector_store %arg10[%c0_27, %c0_28, %c0_29], %83 {strides = array<i32>} : memref<1x2x256xf32, #tpu.memory_space<vmem>>, vector<1x1x256xf32>,
    %cst_30 = arith.constant 0.000000e+00 : f32
    %84 = vector.broadcast %cst_30 : f32 to vector<1x256xf32>
    %85 = arith.subf %84, %71 : vector<1x256xf32>
    %86 = math.absf %85 : vector<1x256xf32>
    %cst_31 = arith.constant 0.000000e+00 : f32
    %87 = vector.broadcast %cst_31 : f32 to vector<1x256xf32>
    %88 = arith.subf %87, %86 : vector<1x256xf32>
    %89 = math.exp %88 : vector<1x256xf32>
    %90 = math.log1p %89 : vector<1x256xf32>
    %cst_32 = arith.constant 0.000000e+00 : f32
    %91 = vector.broadcast %cst_32 : f32 to vector<1x256xf32>
    %92 = arith.minimumf %85, %91 : vector<1x256xf32>
    %93 = arith.subf %90, %92 : vector<1x256xf32>
    %94 = arith.mulf %93, %7 : vector<1x256xf32>
    %c0_33 = arith.constant 0 : index
    %c1 = arith.constant 1 : index
    %c0_34 = arith.constant 0 : index
    %95 = vector.load %arg10[%c0_33, %c1, %c0_34] : memref<1x2x256xf32, #tpu.memory_space<vmem>>, vector<1x1x256xf32>
    %96 = vector.shape_cast %95 : vector<1x1x256xf32> to vector<1x256xf32>
    %97 = vector.shape_cast %94 : vector<1x256xf32> to vector<1x1x256xf32>
    tpu.vector_store %arg10[%c0_33, %c1, %c0_34], %97 {strides = array<i32>} : memref<1x2x256xf32, #tpu.memory_space<vmem>>, vector<1x1x256xf32>,
    return
  }
  func.func @transform_0(%arg0: i32) -> (i32, i32, i32) {
    %c0_i32 = arith.constant 0 : i32
    %c0_i32_0 = arith.constant 0 : i32
    %c0_i32_1 = arith.constant 0 : i32
    return %arg0, %c0_i32, %c0_i32_0 : i32, i32, i32
  }
  func.func @transform_1(%arg0: i32) -> (i32, i32) {
    %c0_i32 = arith.constant 0 : i32
    %c0_i32_0 = arith.constant 0 : i32
    return %c0_i32, %arg0 : i32, i32
  }
  func.func @transform_2(%arg0: i32) -> (i32, i32) {
    %c0_i32 = arith.constant 0 : i32
    %c0_i32_0 = arith.constant 0 : i32
    %c0_i32_1 = arith.constant 0 : i32
    return %c0_i32, %c0_i32_0 : i32, i32
  }
  func.func @transform_3(%arg0: i32) -> (i32, i32) {
    %c0_i32 = arith.constant 0 : i32
    %c0_i32_0 = arith.constant 0 : i32
    %c0_i32_1 = arith.constant 0 : i32
    return %c0_i32, %c0_i32_0 : i32, i32
  }
  func.func @transform_4(%arg0: i32) -> (i32, i32) {
    %c0_i32 = arith.constant 0 : i32
    %c0_i32_0 = arith.constant 0 : i32
    %c0_i32_1 = arith.constant 0 : i32
    return %c0_i32, %c0_i32_0 : i32, i32
  }
  func.func @transform_5(%arg0: i32) -> (i32, i32) {
    %c0_i32 = arith.constant 0 : i32
    %c0_i32_0 = arith.constant 0 : i32
    %c0_i32_1 = arith.constant 0 : i32
    return %c0_i32, %c0_i32_0 : i32, i32
  }
  func.func @transform_6(%arg0: i32) -> (i32, i32) {
    %c0_i32 = arith.constant 0 : i32
    %c0_i32_0 = arith.constant 0 : i32
    %c0_i32_1 = arith.constant 0 : i32
    return %c0_i32, %c0_i32_0 : i32, i32
  }
  func.func @transform_7(%arg0: i32) -> (i32, i32) {
    %c0_i32 = arith.constant 0 : i32
    %c0_i32_0 = arith.constant 0 : i32
    %c0_i32_1 = arith.constant 0 : i32
    return %c0_i32, %c0_i32_0 : i32, i32
  }
  func.func @transform_8(%arg0: i32) -> (i32, i32) {
    %c0_i32 = arith.constant 0 : i32
    %c0_i32_0 = arith.constant 0 : i32
    %c0_i32_1 = arith.constant 0 : i32
    return %c0_i32, %c0_i32_0 : i32, i32
  }
  func.func @transform_9(%arg0: i32) -> (i32, i32, i32) {
    %c0_i32 = arith.constant 0 : i32
    %c0_i32_0 = arith.constant 0 : i32
    %c0_i32_1 = arith.constant 0 : i32
    return %arg0, %c0_i32, %c0_i32_0 : i32, i32, i32
  }
}

</mosaic_0001>

<llo_original>
// kernel: tpu_custom_call.1
$region0: #{tpu_custom_call.1}
  #allocation0 [shape = 'u32[]', space=smem, size = 0x4, offset = 0x4, fixed_abs, tag = 'smem constant byte address 0x4 - core index']
  #allocation1 [shape = 'u32[144,128]{1,0:T(1,128)}', space=vmem, size = 0x12000, scoped, tag = 'internal scratch']
  #allocation2 [shape = 'f32[1,1]{1,0:T(1,128)S(1)}', space=vmem, size = 0x200, scoped, tag = 'scoped memory for tpu_custom_call.1']
  %s0 = inlined_call_operand.vmem [shape: bf16[1,8,1536], index: 0, kind: input, shape index: {}]
  %s1 = inlined_call_operand.vmem [shape: bf16[16,256], index: 1, kind: input, shape index: {}]
  %s2 = inlined_call_operand.vmem [shape: bf16[32,8], index: 2, kind: input, shape index: {}]
  %s3 = inlined_call_operand.vmem [shape: bf16[32,16], index: 3, kind: input, shape index: {}]
  %s4 = inlined_call_operand.vmem [shape: f32[32,1], index: 4, kind: input, shape index: {}]
  %s5 = inlined_call_operand.vmem [shape: bf16[32,32], index: 5, kind: input, shape index: {}]
  %s6 = inlined_call_operand.vmem [shape: f32[32,1], index: 6, kind: input, shape index: {}]
  %s7 = inlined_call_operand.vmem [shape: f32[32,1], index: 7, kind: input, shape index: {}]
  %s8 = inlined_call_operand.<no memory space> [shape: f32[1,1], index: 8, kind: input, shape index: {}]
  %s9 = inlined_call_operand.hbm [shape: f32[1,2,256], index: 9, kind: output, shape index: {}]
  %s10 = sld [smem:[#allocation0]]
  $region46: #{tpu_custom_call.1} parent=0
    _
  %s12 = ssub.s32 1, %s10
  %s13 = scalar_select 0, %s12, %s10
  %v14 = vstv %s8
  %15 = vst [vmem:[#allocation2] sm:$0x1] %v14
  $region1: #{tpu_custom_call.1} parent=0
    #allocation3 [shape = 'u8[2048]{0}', space=vmem, size = 0x800, scoped, tag = 'output window, operand 0, single buffered']
    #allocation4 [shape = 's32[1]{0}', space=sflag, size = 0x4, scoped, tag = 'scoped memory for tpu_custom_call.1']
    %16 = vsyncpa [#allocation4], 0
    // Predicated region
    $region2: #{tpu_custom_call.1} parent=1 // pred_check
      _
    $region3: #{tpu_custom_call.1} parent=1 // pred_check_branch
      %18 = sbr.rel (0) target = $region5
    $region4: #{tpu_custom_call.1} parent=1 // pred_region
      _
    $region5: #{tpu_custom_call.1} parent=1 // pred_fallthru
      _
    // Predicated region
    $region6: #{tpu_custom_call.1} parent=1 // pred_check
      _
    $region7: #{tpu_custom_call.1} parent=1 // pred_check_branch
      %20 = sbr.rel (0) target = $region9
    $region8: #{tpu_custom_call.1} parent=1 // pred_region
      _
    $region9: #{tpu_custom_call.1} parent=1 // pred_fallthru
      _
    // Predicated region
    $region10: #{tpu_custom_call.1} parent=1 // pred_check
      _
    $region11: #{tpu_custom_call.1} parent=1 // pred_check_branch
      %22 = sbr.rel (0) target = $region13
    $region12: #{tpu_custom_call.1} parent=1 // pred_region
      _
    $region13: #{tpu_custom_call.1} parent=1 // pred_fallthru
      _
    // Predicated region
    $region14: #{tpu_custom_call.1} parent=1 // pred_check
      _
    $region15: #{tpu_custom_call.1} parent=1 // pred_check_branch
      %24 = sbr.rel (0) target = $region17
    $region16: #{tpu_custom_call.1} parent=1 // pred_region
      _
    $region17: #{tpu_custom_call.1} parent=1 // pred_fallthru
      _
    // Predicated region
    $region18: #{tpu_custom_call.1} parent=1 // pred_check
      _
    $region19: #{tpu_custom_call.1} parent=1 // pred_check_branch
      %26 = sbr.rel (0) target = $region21
    $region20: #{tpu_custom_call.1} parent=1 // pred_region
      _
    $region21: #{tpu_custom_call.1} parent=1 // pred_fallthru
      _
    // Predicated region
    $region22: #{tpu_custom_call.1} parent=1 // pred_check
      _
    $region23: #{tpu_custom_call.1} parent=1 // pred_check_branch
      %28 = sbr.rel (0) target = $region25
    $region24: #{tpu_custom_call.1} parent=1 // pred_region
      _
    $region25: #{tpu_custom_call.1} parent=1 // pred_fallthru
      _
    // Predicated region
    $region26: #{tpu_custom_call.1} parent=1 // pred_check
      _
    $region27: #{tpu_custom_call.1} parent=1 // pred_check_branch
      %30 = sbr.rel (0) target = $region29
    $region28: #{tpu_custom_call.1} parent=1 // pred_region
      _
    $region29: #{tpu_custom_call.1} parent=1 // pred_fallthru
      _
    // Predicated region
    $region30: #{tpu_custom_call.1} parent=1 // pred_check
      _
    $region31: #{tpu_custom_call.1} parent=1 // pred_check_branch
      %32 = sbr.rel (0) target = $region33
    $region32: #{tpu_custom_call.1} parent=1 // pred_region
      _
    $region33: #{tpu_custom_call.1} parent=1 // pred_fallthru
      _
    // Predicated region
    $region34: #{tpu_custom_call.1} parent=1 // pred_check
      _
    $region35: #{tpu_custom_call.1} parent=1 // pred_check_branch
      %34 = sbr.rel (0) target = $region37
    $region36: #{tpu_custom_call.1} parent=1 // pred_region
      _
    $region37: #{tpu_custom_call.1} parent=1 // pred_fallthru
      _
    %v36 = vlaneseq
    %v37 = vand.u32 %v36, 127
    %v38 = vadd.s32 %v37, 128
    %s39 = smul.u32 0, 256
    %v40 = vstv %s39
    %v41 = vadd.s32 %v37, %v40
    %v42 = vadd.s32 %v38, %v40
    %vm43 = vcmp.lt.s32.totalorder %v41, 200
    %vm44 = vcmp.lt.s32.totalorder %v42, 200
    %v45 = vsel %vm43, 1, 0
    %v46 = vsel %vm44, 1, 0
    %v47 = vcvt.s32.f32 %v45
    %v48 = vcvt.s32.f32 %v46
    %v49 = vld [vmem:[%s3] sm:$0xf]
    %v50 = vld [vmem:[%s3 + $0x4] sm:$0xf]
    %v51 = vld [vmem:[%s3 + $0x8] sm:$0xf]
    %v52 = vld [vmem:[%s3 + $0xc] sm:$0xf]
    %v53 = vld [vmem:[%s1] sm:$0xff]
    %v54 = vld [vmem:[%s1 + $0x8] sm:$0xff]
    %v55 = vld [vmem:[%s4] sm:$0xff]
    %v56 = vld [vmem:[%s4 + $0x8] sm:$0xff]
    %v57 = vld [vmem:[%s4 + $0x10] sm:$0xff]
    %v58 = vld [vmem:[%s4 + $0x18] sm:$0xff]
    %60 = vset.pattern.permute.xlu0 0
    %61 = vperm.xlu0 %60, %v55
    %v62 = vpop.permute.xlu0 %61
    %65 = vset.pattern.permute.xlu0 0
    %66 = vperm.xlu0 %65, %v56
    %v67 = vpop.permute.xlu0 %66
    %70 = vset.pattern.permute.xlu0 0
    %71 = vperm.xlu0 %70, %v57
    %v72 = vpop.permute.xlu0 %71
    %75 = vset.pattern.permute.xlu0 0
    %76 = vperm.xlu0 %75, %v58
    %v77 = vpop.permute.xlu0 %76
    %v83 = vunpack.c.l.b16 %v49
    %v84 = vunpack.c.l.b16 %v50
    %v85 = vunpack.c.l.b16 %v51
    %v86 = vunpack.c.l.b16 %v52
    %v87 = vpack.c.b16 %v84, %v83
    %v88 = vpack.c.b16 %v86, %v85
    %v91 = vunpack.c.l.b16 %v53
    %v92 = vunpack.c.h.b16 %v53
    %v93 = vunpack.c.l.b16 %v54
    %v94 = vunpack.c.h.b16 %v54
    %v95 = vpack.c.b16 %v93, %v91
    %v96 = vpack.c.b16 %v94, %v92
    %vm99 = vcmask 130048
    %v101 = vsel %vm99, %v87, 0
    %v104 = vsel %vm99, %v88, 0
    %106 = vmatprep.subr.bf16.mxu0 %v96
    %107 = vmatpush1.bf16.msra.mxu0 %v95
    %108 = vmatprep.subr.bf16.mxu0 0
    %109 = vmatpush1.bf16.msra.mxu0 0
    %110 = vmatprep.subr.bf16.mxu0 0
    %111 = vmatpush1.bf16.msra.mxu0 0
    %112 = vmatprep.subr.bf16.mxu0 0
    %113 = vmatpush1.bf16.msra.mxu0 0
    %114 = vmatprep.subr.bf16.mxu0 0
    %115 = vmatpush1.bf16.msra.mxu0 0
    %116 = vmatprep.subr.bf16.mxu0 0
    %117 = vmatpush1.bf16.msra.mxu0 0
    %118 = vmatprep.subr.bf16.mxu0 0
    %119 = vmatpush1.bf16.msra.mxu0 0
    %120 = vmatprep.subr.bf16.mxu0 0
    %121 = vmatpush1.bf16.msra.mxu0 0
    %122 = vmatprep.subr.bf16.mxu0 0
    %123 = vmatpush1.bf16.msra.mxu0 0
    %124 = vmatprep.subr.bf16.mxu0 0
    %125 = vmatpush1.bf16.msra.mxu0 0
    %126 = vmatprep.subr.bf16.mxu0 0
    %127 = vmatpush1.bf16.msra.mxu0 0
    %128 = vmatprep.subr.bf16.mxu0 0
    %129 = vmatpush1.bf16.msra.mxu0 0
    %130 = vmatprep.subr.bf16.mxu0 0
    %131 = vmatpush1.bf16.msra.mxu0 0
    %132 = vmatprep.subr.bf16.mxu0 0
    %133 = vmatpush1.bf16.msra.mxu0 0
    %134 = vmatprep.subr.bf16.mxu0 0
    %135 = vmatpush1.bf16.msra.mxu0 0
    %136 = vmatprep.subr.bf16.mxu0 0
    %137 = vmatpush1.bf16.msra.mxu0 0
    %138 = vmatprep.mubr.bf16.mxu0 0
    %139 = vmatmul.mubr.bf16.gmra.mrb[0].mxu0 %v101
    %v140 = vpop.f32.mrb[0].mxu0
    %v141 = vadd.f32 %v62, %v140
    %v142 = vpop.f32.mrb[0].mxu0
    %v143 = vadd.f32 %v62, %v142
    %v144 = vpop.f32.mrb[0].mxu0
    %v145 = vadd.f32 %v67, %v144
    %v146 = vpop.f32.mrb[0].mxu0
    %v147 = vadd.f32 %v67, %v146
    %148 = vmatprep.mubr.bf16.mxu0 0
    %149 = vmatmul.mubr.bf16.gmra.mrb[0].mxu0 %v104
    %v150 = vpop.f32.mrb[0].mxu0
    %v151 = vadd.f32 %v72, %v150
    %v152 = vpop.f32.mrb[0].mxu0
    %v153 = vadd.f32 %v72, %v152
    %v154 = vpop.f32.mrb[0].mxu0
    %v155 = vadd.f32 %v77, %v154
    %v156 = vpop.f32.mrb[0].mxu0
    %v157 = vadd.f32 %v77, %v156
    %158 = vdwg.mxu0
    %v159 = vld [vmem:[%s2] sm:$0xf]
    %v160 = vld [vmem:[%s2 + $0x4] sm:$0xf]
    %v161 = vld [vmem:[%s2 + $0x8] sm:$0xf]
    %v162 = vld [vmem:[%s2 + $0xc] sm:$0xf]
    %v163 = vld [vmem:[%s0] sm:$0xff]
    %v164 = vld [vmem:[%s0 + $0x8] sm:$0xff]
    %v165 = vld [vmem:[%s0 + $0x10] sm:$0xff]
    %v166 = vld [vmem:[%s0 + $0x18] sm:$0xff]
    %v167 = vld [vmem:[%s0 + $0x20] sm:$0xff]
    %v168 = vld [vmem:[%s0 + $0x28] sm:$0xff]
    %v173 = vunpack.c.l.b16 %v159
    %v174 = vunpack.c.l.b16 %v160
    %v175 = vunpack.c.l.b16 %v161
    %v176 = vunpack.c.l.b16 %v162
    %v177 = vpack.c.b16 %v174, %v173
    %v178 = vpack.c.b16 %v176, %v175
    %v185 = vunpack.c.l.b16 %v163
    %v186 = vunpack.c.h.b16 %v163
    %v187 = vunpack.c.l.b16 %v164
    %v188 = vunpack.c.h.b16 %v164
    %v189 = vunpack.c.l.b16 %v165
    %v190 = vunpack.c.h.b16 %v165
    %v191 = vunpack.c.l.b16 %v166
    %v192 = vunpack.c.h.b16 %v166
    %v193 = vunpack.c.l.b16 %v167
    %v194 = vunpack.c.h.b16 %v167
    %v195 = vunpack.c.l.b16 %v168
    %v196 = vunpack.c.h.b16 %v168
    %v197 = vpack.c.b16 %v185, %v185
    %v198 = vpack.c.b16 %v186, %v186
    %v199 = vpack.c.b16 %v187, %v187
    %v200 = vpack.c.b16 %v188, %v188
    %v201 = vpack.c.b16 %v189, %v189
    %v202 = vpack.c.b16 %v190, %v190
    %v203 = vpack.c.b16 %v191, %v191
    %v204 = vpack.c.b16 %v192, %v192
    %v205 = vpack.c.b16 %v193, %v193
    %v206 = vpack.c.b16 %v194, %v194
    %v207 = vpack.c.b16 %v195, %v195
    %v208 = vpack.c.b16 %v196, %v196
    %vm209 = vcmask 64512
    %v211 = vsel %vm209, %v177, 0
    %v214 = vsel %vm209, %v178, 0
    %vm216 = vcmask 1043456
    %v218 = vsel %vm216, %v197, 0
    %v221 = vsel %vm216, %v198, 0
    %v224 = vsel %vm216, %v199, 0
    %v227 = vsel %vm216, %v200, 0
    %v230 = vsel %vm216, %v201, 0
    %v233 = vsel %vm216, %v202, 0
    %v236 = vsel %vm216, %v203, 0
    %v239 = vsel %vm216, %v204, 0
    %v242 = vsel %vm216, %v205, 0
    %v245 = vsel %vm216, %v206, 0
    %v248 = vsel %vm216, %v207, 0
    %v251 = vsel %vm216, %v208, 0
    %253 = vmatprep.subr.bf16.mxu0 %v221
    %254 = vmatpush1.bf16.msra.mxu0 %v218
    %255 = vmatprep.subr.bf16.mxu0 0
    %256 = vmatpush1.bf16.msra.mxu0 0
    %257 = vmatprep.subr.bf16.mxu0 0
    %258 = vmatpush1.bf16.msra.mxu0 0
    %259 = vmatprep.subr.bf16.mxu0 0
    %260 = vmatpush1.bf16.msra.mxu0 0
    %261 = vmatprep.subr.bf16.mxu0 0
    %262 = vmatpush1.bf16.msra.mxu0 0
    %263 = vmatprep.subr.bf16.mxu0 0
    %264 = vmatpush1.bf16.msra.mxu0 0
    %265 = vmatprep.subr.bf16.mxu0 0
    %266 = vmatpush1.bf16.msra.mxu0 0
    %267 = vmatprep.subr.bf16.mxu0 0
    %268 = vmatpush1.bf16.msra.mxu0 0
    %269 = vmatprep.subr.bf16.mxu0 0
    %270 = vmatpush1.bf16.msra.mxu0 0
    %271 = vmatprep.subr.bf16.mxu0 0
    %272 = vmatpush1.bf16.msra.mxu0 0
    %273 = vmatprep.subr.bf16.mxu0 0
    %274 = vmatpush1.bf16.msra.mxu0 0
    %275 = vmatprep.subr.bf16.mxu0 0
    %276 = vmatpush1.bf16.msra.mxu0 0
    %277 = vmatprep.subr.bf16.mxu0 0
    %278 = vmatpush1.bf16.msra.mxu0 0
    %279 = vmatprep.subr.bf16.mxu0 0
    %280 = vmatpush1.bf16.msra.mxu0 0
    %281 = vmatprep.subr.bf16.mxu0 0
    %282 = vmatpush1.bf16.msra.mxu0 0
    %283 = vmatprep.subr.bf16.mxu0 0
    %284 = vmatpush1.bf16.msra.mxu0 0
    %285 = vmatprep.mubr.bf16.mxu0 0
    %286 = vmatmul.mubr.bf16.gmra.mrb[0].mxu0 %v211
    %v287 = vpop.f32.mrb[0].mxu0
    %v288 = vadd.f32 %v141, %v287
    %v289 = vpop.f32.mrb[0].mxu0
    %v290 = vadd.f32 %v143, %v289
    %v291 = vpop.f32.mrb[0].mxu0
    %v292 = vadd.f32 %v145, %v291
    %v293 = vpop.f32.mrb[0].mxu0
    %v294 = vadd.f32 %v147, %v293
    %295 = vmatprep.mubr.bf16.mxu0 0
    %296 = vmatmul.mubr.bf16.gmra.mrb[0].mxu0 %v214
    %v297 = vpop.f32.mrb[0].mxu0
    %v298 = vadd.f32 %v151, %v297
    %v299 = vpop.f32.mrb[0].mxu0
    %v300 = vadd.f32 %v153, %v299
    %v301 = vpop.f32.mrb[0].mxu0
    %v302 = vadd.f32 %v155, %v301
    %v303 = vpop.f32.mrb[0].mxu0
    %v304 = vadd.f32 %v157, %v303
    %305 = vdwg.mxu0
    %306 = vmatprep.subr.bf16.mxu0 %v227
    %307 = vmatpush1.bf16.msra.mxu0 %v224
    %308 = vmatprep.subr.bf16.mxu0 0
    %309 = vmatpush1.bf16.msra.mxu0 0
    %310 = vmatprep.subr.bf16.mxu0 0
    %311 = vmatpush1.bf16.msra.mxu0 0
    %312 = vmatprep.subr.bf16.mxu0 0
    %313 = vmatpush1.bf16.msra.mxu0 0
    %314 = vmatprep.subr.bf16.mxu0 0
    %315 = vmatpush1.bf16.msra.mxu0 0
    %316 = vmatprep.subr.bf16.mxu0 0
    %317 = vmatpush1.bf16.msra.mxu0 0
    %318 = vmatprep.subr.bf16.mxu0 0
    %319 = vmatpush1.bf16.msra.mxu0 0
    %320 = vmatprep.subr.bf16.mxu0 0
    %321 = vmatpush1.bf16.msra.mxu0 0
    %322 = vmatprep.subr.bf16.mxu0 0
    %323 = vmatpush1.bf16.msra.mxu0 0
    %324 = vmatprep.subr.bf16.mxu0 0
    %325 = vmatpush1.bf16.msra.mxu0 0
    %326 = vmatprep.subr.bf16.mxu0 0
    %327 = vmatpush1.bf16.msra.mxu0 0
    %328 = vmatprep.subr.bf16.mxu0 0
    %329 = vmatpush1.bf16.msra.mxu0 0
    %330 = vmatprep.subr.bf16.mxu0 0
    %331 = vmatpush1.bf16.msra.mxu0 0
    %332 = vmatprep.subr.bf16.mxu0 0
    %333 = vmatpush1.bf16.msra.mxu0 0
    %334 = vmatprep.subr.bf16.mxu0 0
    %335 = vmatpush1.bf16.msra.mxu0 0
    %336 = vmatprep.subr.bf16.mxu0 0
    %337 = vmatpush1.bf16.msra.mxu0 0
    %338 = vmatprep.mubr.bf16.mxu0 0
    %339 = vmatmul.mubr.bf16.gmra.mrb[0].mxu0 %v211
    %v340 = vpop.f32.mrb[0].mxu0
    %v341 = vadd.f32 %v141, %v340
    %v342 = vpop.f32.mrb[0].mxu0
    %v343 = vadd.f32 %v143, %v342
    %v344 = vpop.f32.mrb[0].mxu0
    %v345 = vadd.f32 %v145, %v344
    %v346 = vpop.f32.mrb[0].mxu0
    %v347 = vadd.f32 %v147, %v346
    %348 = vmatprep.mubr.bf16.mxu0 0
    %349 = vmatmul.mubr.bf16.gmra.mrb[0].mxu0 %v214
    %v350 = vpop.f32.mrb[0].mxu0
    %v351 = vadd.f32 %v151, %v350
    %v352 = vpop.f32.mrb[0].mxu0
    %v353 = vadd.f32 %v153, %v352
    %v354 = vpop.f32.mrb[0].mxu0
    %v355 = vadd.f32 %v155, %v354
    %v356 = vpop.f32.mrb[0].mxu0
    %v357 = vadd.f32 %v157, %v356
    %358 = vdwg.mxu0
    %359 = vmatprep.subr.bf16.mxu0 %v233
    %360 = vmatpush1.bf16.msra.mxu0 %v230
    %361 = vmatprep.subr.bf16.mxu0 0
    %362 = vmatpush1.bf16.msra.mxu0 0
    %363 = vmatprep.subr.bf16.mxu0 0
    %364 = vmatpush1.bf16.msra.mxu0 0
    %365 = vmatprep.subr.bf16.mxu0 0
    %366 = vmatpush1.bf16.msra.mxu0 0
    %367 = vmatprep.subr.bf16.mxu0 0
    %368 = vmatpush1.bf16.msra.mxu0 0
    %369 = vmatprep.subr.bf16.mxu0 0
    %370 = vmatpush1.bf16.msra.mxu0 0
    %371 = vmatprep.subr.bf16.mxu0 0
    %372 = vmatpush1.bf16.msra.mxu0 0
    %373 = vmatprep.subr.bf16.mxu0 0
    %374 = vmatpush1.bf16.msra.mxu0 0
    %375 = vmatprep.subr.bf16.mxu0 0
    %376 = vmatpush1.bf16.msra.mxu0 0
    %377 = vmatprep.subr.bf16.mxu0 0
    %378 = vmatpush1.bf16.msra.mxu0 0
    %379 = vmatprep.subr.bf16.mxu0 0
    %380 = vmatpush1.bf16.msra.mxu0 0
    %381 = vmatprep.subr.bf16.mxu0 0
    %382 = vmatpush1.bf16.msra.mxu0 0
    %383 = vmatprep.subr.bf16.mxu0 0
    %384 = vmatpush1.bf16.msra.mxu0 0
    %385 = vmatprep.subr.bf16.mxu0 0
    %386 = vmatpush1.bf16.msra.mxu0 0
    %387 = vmatprep.subr.bf16.mxu0 0
    %388 = vmatpush1.bf16.msra.mxu0 0
    %389 = vmatprep.subr.bf16.mxu0 0
    %390 = vmatpush1.bf16.msra.mxu0 0
    %391 = vmatprep.mubr.bf16.mxu0 0
    %392 = vmatmul.mubr.bf16.gmra.mrb[0].mxu0 %v211
    %v393 = vpop.f32.mrb[0].mxu0
    %v394 = vadd.f32 %v141, %v393
    %v395 = vpop.f32.mrb[0].mxu0
    %v396 = vadd.f32 %v143, %v395
    %v397 = vpop.f32.mrb[0].mxu0
    %v398 = vadd.f32 %v145, %v397
    %v399 = vpop.f32.mrb[0].mxu0
    %v400 = vadd.f32 %v147, %v399
    %401 = vmatprep.mubr.bf16.mxu0 0
    %402 = vmatmul.mubr.bf16.gmra.mrb[0].mxu0 %v214
    %v403 = vpop.f32.mrb[0].mxu0
    %v404 = vadd.f32 %v151, %v403
    %v405 = vpop.f32.mrb[0].mxu0
    %v406 = vadd.f32 %v153, %v405
    %v407 = vpop.f32.mrb[0].mxu0
    %v408 = vadd.f32 %v155, %v407
    %v409 = vpop.f32.mrb[0].mxu0
    %v410 = vadd.f32 %v157, %v409
    %411 = vdwg.mxu0
    %412 = vmatprep.subr.bf16.mxu0 %v239
    %413 = vmatpush1.bf16.msra.mxu0 %v236
    %414 = vmatprep.subr.bf16.mxu0 0
    %415 = vmatpush1.bf16.msra.mxu0 0
    %416 = vmatprep.subr.bf16.mxu0 0
    %417 = vmatpush1.bf16.msra.mxu0 0
    %418 = vmatprep.subr.bf16.mxu0 0
    %419 = vmatpush1.bf16.msra.mxu0 0
    %420 = vmatprep.subr.bf16.mxu0 0
    %421 = vmatpush1.bf16.msra.mxu0 0
    %422 = vmatprep.subr.bf16.mxu0 0
    %423 = vmatpush1.bf16.msra.mxu0 0
    %424 = vmatprep.subr.bf16.mxu0 0
    %425 = vmatpush1.bf16.msra.mxu0 0
    %426 = vmatprep.subr.bf16.mxu0 0
    %427 = vmatpush1.bf16.msra.mxu0 0
    %428 = vmatprep.subr.bf16.mxu0 0
    %429 = vmatpush1.bf16.msra.mxu0 0
    %430 = vmatprep.subr.bf16.mxu0 0
    %431 = vmatpush1.bf16.msra.mxu0 0
    %432 = vmatprep.subr.bf16.mxu0 0
    %433 = vmatpush1.bf16.msra.mxu0 0
    %434 = vmatprep.subr.bf16.mxu0 0
    %435 = vmatpush1.bf16.msra.mxu0 0
    %436 = vmatprep.subr.bf16.mxu0 0
    %437 = vmatpush1.bf16.msra.mxu0 0
    %438 = vmatprep.subr.bf16.mxu0 0
    %439 = vmatpush1.bf16.msra.mxu0 0
    %440 = vmatprep.subr.bf16.mxu0 0
    %441 = vmatpush1.bf16.msra.mxu0 0
    %442 = vmatprep.subr.bf16.mxu0 0
    %443 = vmatpush1.bf16.msra.mxu0 0
    %444 = vmatprep.mubr.bf16.mxu0 0
    %445 = vmatmul.mubr.bf16.gmra.mrb[0].mxu0 %v211
    %v446 = vpop.f32.mrb[0].mxu0
    %v447 = vadd.f32 %v141, %v446
    %v448 = vpop.f32.mrb[0].mxu0
    %v449 = vadd.f32 %v143, %v448
    %v450 = vpop.f32.mrb[0].mxu0
    %v451 = vadd.f32 %v145, %v450
    %v452 = vpop.f32.mrb[0].mxu0
    %v453 = vadd.f32 %v147, %v452
    %454 = vmatprep.mubr.bf16.mxu0 0
    %455 = vmatmul.mubr.bf16.gmra.mrb[0].mxu0 %v214
    %v456 = vpop.f32.mrb[0].mxu0
    %v457 = vadd.f32 %v151, %v456
    %v458 = vpop.f32.mrb[0].mxu0
    %v459 = vadd.f32 %v153, %v458
    %v460 = vpop.f32.mrb[0].mxu0
    %v461 = vadd.f32 %v155, %v460
    %v462 = vpop.f32.mrb[0].mxu0
    %v463 = vadd.f32 %v157, %v462
    %464 = vdwg.mxu0
    %465 = vmatprep.subr.bf16.mxu0 %v245
    %466 = vmatpush1.bf16.msra.mxu0 %v242
    %467 = vmatprep.subr.bf16.mxu0 0
    %468 = vmatpush1.bf16.msra.mxu0 0
    %469 = vmatprep.subr.bf16.mxu0 0
    %470 = vmatpush1.bf16.msra.mxu0 0
    %471 = vmatprep.subr.bf16.mxu0 0
    %472 = vmatpush1.bf16.msra.mxu0 0
    %473 = vmatprep.subr.bf16.mxu0 0
    %474 = vmatpush1.bf16.msra.mxu0 0
    %475 = vmatprep.subr.bf16.mxu0 0
    %476 = vmatpush1.bf16.msra.mxu0 0
    %477 = vmatprep.subr.bf16.mxu0 0
    %478 = vmatpush1.bf16.msra.mxu0 0
    %479 = vmatprep.subr.bf16.mxu0 0
    %480 = vmatpush1.bf16.msra.mxu0 0
    %481 = vmatprep.subr.bf16.mxu0 0
    %482 = vmatpush1.bf16.msra.mxu0 0
    %483 = vmatprep.subr.bf16.mxu0 0
    %484 = vmatpush1.bf16.msra.mxu0 0
    %485 = vmatprep.subr.bf16.mxu0 0
    %486 = vmatpush1.bf16.msra.mxu0 0
    %487 = vmatprep.subr.bf16.mxu0 0
    %488 = vmatpush1.bf16.msra.mxu0 0
    %489 = vmatprep.subr.bf16.mxu0 0
    %490 = vmatpush1.bf16.msra.mxu0 0
    %491 = vmatprep.subr.bf16.mxu0 0
    %492 = vmatpush1.bf16.msra.mxu0 0
    %493 = vmatprep.subr.bf16.mxu0 0
    %494 = vmatpush1.bf16.msra.mxu0 0
    %495 = vmatprep.subr.bf16.mxu0 0
    %496 = vmatpush1.bf16.msra.mxu0 0
    %497 = vmatprep.mubr.bf16.mxu0 0
    %498 = vmatmul.mubr.bf16.gmra.mrb[0].mxu0 %v211
    %v499 = vpop.f32.mrb[0].mxu0
    %v500 = vadd.f32 %v141, %v499
    %v501 = vpop.f32.mrb[0].mxu0
    %v502 = vadd.f32 %v143, %v501
    %v503 = vpop.f32.mrb[0].mxu0
    %v504 = vadd.f32 %v145, %v503
    %v505 = vpop.f32.mrb[0].mxu0
    %v506 = vadd.f32 %v147, %v505
    %507 = vmatprep.mubr.bf16.mxu0 0
    %508 = vmatmul.mubr.bf16.gmra.mrb[0].mxu0 %v214
    %v509 = vpop.f32.mrb[0].mxu0
    %v510 = vadd.f32 %v151, %v509
    %v511 = vpop.f32.mrb[0].mxu0
    %v512 = vadd.f32 %v153, %v511
    %v513 = vpop.f32.mrb[0].mxu0
    %v514 = vadd.f32 %v155, %v513
    %v515 = vpop.f32.mrb[0].mxu0
    %v516 = vadd.f32 %v157, %v515
    %517 = vdwg.mxu0
    %518 = vmatprep.subr.bf16.mxu0 %v251
    %519 = vmatpush1.bf16.msra.mxu0 %v248
    %520 = vmatprep.subr.bf16.mxu0 0
    %521 = vmatpush1.bf16.msra.mxu0 0
    %522 = vmatprep.subr.bf16.mxu0 0
    %523 = vmatpush1.bf16.msra.mxu0 0
    %524 = vmatprep.subr.bf16.mxu0 0
    %525 = vmatpush1.bf16.msra.mxu0 0
    %526 = vmatprep.subr.bf16.mxu0 0
    %527 = vmatpush1.bf16.msra.mxu0 0
    %528 = vmatprep.subr.bf16.mxu0 0
    %529 = vmatpush1.bf16.msra.mxu0 0
    %530 = vmatprep.subr.bf16.mxu0 0
    %531 = vmatpush1.bf16.msra.mxu0 0
    %532 = vmatprep.subr.bf16.mxu0 0
    %533 = vmatpush1.bf16.msra.mxu0 0
    %534 = vmatprep.subr.bf16.mxu0 0
    %535 = vmatpush1.bf16.msra.mxu0 0
    %536 = vmatprep.subr.bf16.mxu0 0
    %537 = vmatpush1.bf16.msra.mxu0 0
    %538 = vmatprep.subr.bf16.mxu0 0
    %539 = vmatpush1.bf16.msra.mxu0 0
    %540 = vmatprep.subr.bf16.mxu0 0
    %541 = vmatpush1.bf16.msra.mxu0 0
    %542 = vmatprep.subr.bf16.mxu0 0
    %543 = vmatpush1.bf16.msra.mxu0 0
    %544 = vmatprep.subr.bf16.mxu0 0
    %545 = vmatpush1.bf16.msra.mxu0 0
    %546 = vmatprep.subr.bf16.mxu0 0
    %547 = vmatpush1.bf16.msra.mxu0 0
    %548 = vmatprep.subr.bf16.mxu0 0
    %549 = vmatpush1.bf16.msra.mxu0 0
    %550 = vmatprep.mubr.bf16.mxu0 0
    %551 = vmatmul.mubr.bf16.gmra.mrb[0].mxu0 %v211
    %v552 = vpop.f32.mrb[0].mxu0
    %v553 = vadd.f32 %v141, %v552
    %v554 = vpop.f32.mrb[0].mxu0
    %v555 = vadd.f32 %v143, %v554
    %v556 = vpop.f32.mrb[0].mxu0
    %v557 = vadd.f32 %v145, %v556
    %v558 = vpop.f32.mrb[0].mxu0
    %v559 = vadd.f32 %v147, %v558
    %560 = vmatprep.mubr.bf16.mxu0 0
    %561 = vmatmul.mubr.bf16.gmra.mrb[0].mxu0 %v214
    %v562 = vpop.f32.mrb[0].mxu0
    %v563 = vadd.f32 %v151, %v562
    %v564 = vpop.f32.mrb[0].mxu0
    %v565 = vadd.f32 %v153, %v564
    %v566 = vpop.f32.mrb[0].mxu0
    %v567 = vadd.f32 %v155, %v566
    %v568 = vpop.f32.mrb[0].mxu0
    %v569 = vadd.f32 %v157, %v568
    %570 = vdwg.mxu0
    %v571 = vmax.f32 %v288, 0.0
    %v572 = vmax.f32 %v290, 0.0
    %v573 = vmax.f32 %v341, 0.0
    %v574 = vmax.f32 %v343, 0.0
    %v575 = vmax.f32 %v394, 0.0
    %v576 = vmax.f32 %v396, 0.0
    %v577 = vmax.f32 %v447, 0.0
    %v578 = vmax.f32 %v449, 0.0
    %v579 = vmax.f32 %v500, 0.0
    %v580 = vmax.f32 %v502, 0.0
    %v581 = vmax.f32 %v553, 0.0
    %v582 = vmax.f32 %v555, 0.0
    %v583 = vmax.f32 %v292, 0.0
    %v584 = vmax.f32 %v294, 0.0
    %v585 = vmax.f32 %v345, 0.0
    %v586 = vmax.f32 %v347, 0.0
    %v587 = vmax.f32 %v398, 0.0
    %v588 = vmax.f32 %v400, 0.0
    %v589 = vmax.f32 %v451, 0.0
    %v590 = vmax.f32 %v453, 0.0
    %v591 = vmax.f32 %v504, 0.0
    %v592 = vmax.f32 %v506, 0.0
    %v593 = vmax.f32 %v557, 0.0
    %v594 = vmax.f32 %v559, 0.0
    %v595 = vmax.f32 %v298, 0.0
    %v596 = vmax.f32 %v300, 0.0
    %v597 = vmax.f32 %v351, 0.0
    %v598 = vmax.f32 %v353, 0.0
    %v599 = vmax.f32 %v404, 0.0
    %v600 = vmax.f32 %v406, 0.0
    %v601 = vmax.f32 %v457, 0.0
    %v602 = vmax.f32 %v459, 0.0
    %v603 = vmax.f32 %v510, 0.0
    %v604 = vmax.f32 %v512, 0.0
    %v605 = vmax.f32 %v563, 0.0
    %v606 = vmax.f32 %v565, 0.0
    %v607 = vmax.f32 %v302, 0.0
    %v608 = vmax.f32 %v304, 0.0
    %v609 = vmax.f32 %v355, 0.0
    %v610 = vmax.f32 %v357, 0.0
    %v611 = vmax.f32 %v408, 0.0
    %v612 = vmax.f32 %v410, 0.0
    %v613 = vmax.f32 %v461, 0.0
    %v614 = vmax.f32 %v463, 0.0
    %v615 = vmax.f32 %v514, 0.0
    %v616 = vmax.f32 %v516, 0.0
    %v617 = vmax.f32 %v567, 0.0
    %v618 = vmax.f32 %v569, 0.0
    %v619 = vpack.c.bf16 %v583, %v571
    %v620 = vpack.c.bf16 %v584, %v572
    %v621 = vpack.c.bf16 %v585, %v573
    %v622 = vpack.c.bf16 %v586, %v574
    %v623 = vpack.c.bf16 %v587, %v575
    %v624 = vpack.c.bf16 %v588, %v576
    %v625 = vpack.c.bf16 %v589, %v577
    %v626 = vpack.c.bf16 %v590, %v578
    %v627 = vpack.c.bf16 %v591, %v579
    %v628 = vpack.c.bf16 %v592, %v580
    %v629 = vpack.c.bf16 %v593, %v581
    %v630 = vpack.c.bf16 %v594, %v582
    %v631 = vpack.c.bf16 %v607, %v595
    %v632 = vpack.c.bf16 %v608, %v596
    %v633 = vpack.c.bf16 %v609, %v597
    %v634 = vpack.c.bf16 %v610, %v598
    %v635 = vpack.c.bf16 %v611, %v599
    %v636 = vpack.c.bf16 %v612, %v600
    %v637 = vpack.c.bf16 %v613, %v601
    %v638 = vpack.c.bf16 %v614, %v602
    %v639 = vpack.c.bf16 %v615, %v603
    %v640 = vpack.c.bf16 %v616, %v604
    %v641 = vpack.c.bf16 %v617, %v605
    %v642 = vpack.c.bf16 %v618, %v606
    %v643 = vld [vmem:[%s5] sm:$0xf]
    %v644 = vld [vmem:[%s5 + $0x4] sm:$0xf]
    %v645 = vld [vmem:[%s5 + $0x8] sm:$0xf]
    %v646 = vld [vmem:[%s5 + $0xc] sm:$0xf]
    %v647 = vld [vmem:[%s6] sm:$0xff]
    %v648 = vld [vmem:[%s6 + $0x8] sm:$0xff]
    %v649 = vld [vmem:[%s6 + $0x10] sm:$0xff]
    %v650 = vld [vmem:[%s6 + $0x18] sm:$0xff]
    %652 = vset.pattern.permute.xlu0 0
    %653 = vperm.xlu0 %652, %v647
    %v654 = vpop.permute.xlu0 %653
    %657 = vset.pattern.permute.xlu0 0
    %658 = vperm.xlu0 %657, %v648
    %v659 = vpop.permute.xlu0 %658
    %662 = vset.pattern.permute.xlu0 0
    %663 = vperm.xlu0 %662, %v649
    %v664 = vpop.permute.xlu0 %663
    %667 = vset.pattern.permute.xlu0 0
    %668 = vperm.xlu0 %667, %v650
    %v669 = vpop.permute.xlu0 %668
    %v675 = vunpack.c.l.b16 %v643
    %v676 = vunpack.c.l.b16 %v644
    %v677 = vunpack.c.l.b16 %v645
    %v678 = vunpack.c.l.b16 %v646
    %v679 = vpack.c.b16 %v676, %v675
    %v680 = vpack.c.b16 %v678, %v677
    %vm681 = vcmask 261120
    %v683 = vsel %vm681, %v679, 0
    %v686 = vsel %vm681, %v680, 0
    %688 = vmatprep.subr.bf16.mxu0 %v620
    %689 = vmatpush1.bf16.msra.mxu0 %v619
    %690 = vmatprep.subr.bf16.mxu0 %v632
    %691 = vmatpush1.bf16.msra.mxu0 %v631
    %692 = vmatprep.subr.bf16.mxu0 0
    %693 = vmatpush1.bf16.msra.mxu0 0
    %694 = vmatprep.subr.bf16.mxu0 0
    %695 = vmatpush1.bf16.msra.mxu0 0
    %696 = vmatprep.subr.bf16.mxu0 0
    %697 = vmatpush1.bf16.msra.mxu0 0
    %698 = vmatprep.subr.bf16.mxu0 0
    %699 = vmatpush1.bf16.msra.mxu0 0
    %700 = vmatprep.subr.bf16.mxu0 0
    %701 = vmatpush1.bf16.msra.mxu0 0
    %702 = vmatprep.subr.bf16.mxu0 0
    %703 = vmatpush1.bf16.msra.mxu0 0
    %704 = vmatprep.subr.bf16.mxu0 0
    %705 = vmatpush1.bf16.msra.mxu0 0
    %706 = vmatprep.subr.bf16.mxu0 0
    %707 = vmatpush1.bf16.msra.mxu0 0
    %708 = vmatprep.subr.bf16.mxu0 0
    %709 = vmatpush1.bf16.msra.mxu0 0
    %710 = vmatprep.subr.bf16.mxu0 0
    %711 = vmatpush1.bf16.msra.mxu0 0
    %712 = vmatprep.subr.bf16.mxu0 0
    %713 = vmatpush1.bf16.msra.mxu0 0
    %714 = vmatprep.subr.bf16.mxu0 0
    %715 = vmatpush1.bf16.msra.mxu0 0
    %716 = vmatprep.subr.bf16.mxu0 0
    %717 = vmatpush1.bf16.msra.mxu0 0
    %718 = vmatprep.subr.bf16.mxu0 0
    %719 = vmatpush1.bf16.msra.mxu0 0
    %720 = vmatprep.mubr.bf16.mxu0 0
    %721 = vmatmul.mubr.bf16.gmra.mrb[0].mxu0 %v683
    %v722 = vpop.f32.mrb[0].mxu0
    %v723 = vadd.f32 %v654, %v722
    %v724 = vpop.f32.mrb[0].mxu0
    %v725 = vadd.f32 %v654, %v724
    %v726 = vpop.f32.mrb[0].mxu0
    %v727 = vadd.f32 %v659, %v726
    %v728 = vpop.f32.mrb[0].mxu0
    %v729 = vadd.f32 %v659, %v728
    %730 = vmatprep.mubr.bf16.mxu0 0
    %731 = vmatmul.mubr.bf16.gmra.mrb[0].mxu0 %v686
    %v732 = vpop.f32.mrb[0].mxu0
    %v733 = vadd.f32 %v664, %v732
    %v734 = vpop.f32.mrb[0].mxu0
    %v735 = vadd.f32 %v664, %v734
    %v736 = vpop.f32.mrb[0].mxu0
    %v737 = vadd.f32 %v669, %v736
    %v738 = vpop.f32.mrb[0].mxu0
    %v739 = vadd.f32 %v669, %v738
    %740 = vdwg.mxu0
    %741 = vmatprep.subr.bf16.mxu0 %v622
    %742 = vmatpush1.bf16.msra.mxu0 %v621
    %743 = vmatprep.subr.bf16.mxu0 %v634
    %744 = vmatpush1.bf16.msra.mxu0 %v633
    %745 = vmatprep.subr.bf16.mxu0 0
    %746 = vmatpush1.bf16.msra.mxu0 0
    %747 = vmatprep.subr.bf16.mxu0 0
    %748 = vmatpush1.bf16.msra.mxu0 0
    %749 = vmatprep.subr.bf16.mxu0 0
    %750 = vmatpush1.bf16.msra.mxu0 0
    %751 = vmatprep.subr.bf16.mxu0 0
    %752 = vmatpush1.bf16.msra.mxu0 0
    %753 = vmatprep.subr.bf16.mxu0 0
    %754 = vmatpush1.bf16.msra.mxu0 0
    %755 = vmatprep.subr.bf16.mxu0 0
    %756 = vmatpush1.bf16.msra.mxu0 0
    %757 = vmatprep.subr.bf16.mxu0 0
    %758 = vmatpush1.bf16.msra.mxu0 0
    %759 = vmatprep.subr.bf16.mxu0 0
    %760 = vmatpush1.bf16.msra.mxu0 0
    %761 = vmatprep.subr.bf16.mxu0 0
    %762 = vmatpush1.bf16.msra.mxu0 0
    %763 = vmatprep.subr.bf16.mxu0 0
    %764 = vmatpush1.bf16.msra.mxu0 0
    %765 = vmatprep.subr.bf16.mxu0 0
    %766 = vmatpush1.bf16.msra.mxu0 0
    %767 = vmatprep.subr.bf16.mxu0 0
    %768 = vmatpush1.bf16.msra.mxu0 0
    %769 = vmatprep.subr.bf16.mxu0 0
    %770 = vmatpush1.bf16.msra.mxu0 0
    %771 = vmatprep.subr.bf16.mxu0 0
    %772 = vmatpush1.bf16.msra.mxu0 0
    %773 = vmatprep.mubr.bf16.mxu0 0
    %774 = vmatmul.mubr.bf16.gmra.mrb[0].mxu0 %v683
    %v775 = vpop.f32.mrb[0].mxu0
    %v776 = vadd.f32 %v654, %v775
    %v777 = vpop.f32.mrb[0].mxu0
    %v778 = vadd.f32 %v654, %v777
    %v779 = vpop.f32.mrb[0].mxu0
    %v780 = vadd.f32 %v659, %v779
    %v781 = vpop.f32.mrb[0].mxu0
    %v782 = vadd.f32 %v659, %v781
    %783 = vmatprep.mubr.bf16.mxu0 0
    %784 = vmatmul.mubr.bf16.gmra.mrb[0].mxu0 %v686
    %v785 = vpop.f32.mrb[0].mxu0
    %v786 = vadd.f32 %v664, %v785
    %v787 = vpop.f32.mrb[0].mxu0
    %v788 = vadd.f32 %v664, %v787
    %v789 = vpop.f32.mrb[0].mxu0
    %v790 = vadd.f32 %v669, %v789
    %v791 = vpop.f32.mrb[0].mxu0
    %v792 = vadd.f32 %v669, %v791
    %793 = vdwg.mxu0
    %794 = vmatprep.subr.bf16.mxu0 %v624
    %795 = vmatpush1.bf16.msra.mxu0 %v623
    %796 = vmatprep.subr.bf16.mxu0 %v636
    %797 = vmatpush1.bf16.msra.mxu0 %v635
    %798 = vmatprep.subr.bf16.mxu0 0
    %799 = vmatpush1.bf16.msra.mxu0 0
    %800 = vmatprep.subr.bf16.mxu0 0
    %801 = vmatpush1.bf16.msra.mxu0 0
    %802 = vmatprep.subr.bf16.mxu0 0
    %803 = vmatpush1.bf16.msra.mxu0 0
    %804 = vmatprep.subr.bf16.mxu0 0
    %805 = vmatpush1.bf16.msra.mxu0 0
    %806 = vmatprep.subr.bf16.mxu0 0
    %807 = vmatpush1.bf16.msra.mxu0 0
    %808 = vmatprep.subr.bf16.mxu0 0
    %809 = vmatpush1.bf16.msra.mxu0 0
    %810 = vmatprep.subr.bf16.mxu0 0
    %811 = vmatpush1.bf16.msra.mxu0 0
    %812 = vmatprep.subr.bf16.mxu0 0
    %813 = vmatpush1.bf16.msra.mxu0 0
    %814 = vmatprep.subr.bf16.mxu0 0
    %815 = vmatpush1.bf16.msra.mxu0 0
    %816 = vmatprep.subr.bf16.mxu0 0
    %817 = vmatpush1.bf16.msra.mxu0 0
    %818 = vmatprep.subr.bf16.mxu0 0
    %819 = vmatpush1.bf16.msra.mxu0 0
    %820 = vmatprep.subr.bf16.mxu0 0
    %821 = vmatpush1.bf16.msra.mxu0 0
    %822 = vmatprep.subr.bf16.mxu0 0
    %823 = vmatpush1.bf16.msra.mxu0 0
    %824 = vmatprep.subr.bf16.mxu0 0
    %825 = vmatpush1.bf16.msra.mxu0 0
    %826 = vmatprep.mubr.bf16.mxu0 0
    %827 = vmatmul.mubr.bf16.gmra.mrb[0].mxu0 %v683
    %v828 = vpop.f32.mrb[0].mxu0
    %v829 = vadd.f32 %v654, %v828
    %v830 = vpop.f32.mrb[0].mxu0
    %v831 = vadd.f32 %v654, %v830
    %v832 = vpop.f32.mrb[0].mxu0
    %v833 = vadd.f32 %v659, %v832
    %v834 = vpop.f32.mrb[0].mxu0
    %v835 = vadd.f32 %v659, %v834
    %836 = vmatprep.mubr.bf16.mxu0 0
    %837 = vmatmul.mubr.bf16.gmra.mrb[0].mxu0 %v686
    %v838 = vpop.f32.mrb[0].mxu0
    %v839 = vadd.f32 %v664, %v838
    %v840 = vpop.f32.mrb[0].mxu0
    %v841 = vadd.f32 %v664, %v840
    %v842 = vpop.f32.mrb[0].mxu0
    %v843 = vadd.f32 %v669, %v842
    %v844 = vpop.f32.mrb[0].mxu0
    %v845 = vadd.f32 %v669, %v844
    %846 = vdwg.mxu0
    %847 = vmatprep.subr.bf16.mxu0 %v626
    %848 = vmatpush1.bf16.msra.mxu0 %v625
    %849 = vmatprep.subr.bf16.mxu0 %v638
    %850 = vmatpush1.bf16.msra.mxu0 %v637
    %851 = vmatprep.subr.bf16.mxu0 0
    %852 = vmatpush1.bf16.msra.mxu0 0
    %853 = vmatprep.subr.bf16.mxu0 0
    %854 = vmatpush1.bf16.msra.mxu0 0
    %855 = vmatprep.subr.bf16.mxu0 0
    %856 = vmatpush1.bf16.msra.mxu0 0
    %857 = vmatprep.subr.bf16.mxu0 0
    %858 = vmatpush1.bf16.msra.mxu0 0
    %859 = vmatprep.subr.bf16.mxu0 0
    %860 = vmatpush1.bf16.msra.mxu0 0
    %861 = vmatprep.subr.bf16.mxu0 0
    %862 = vmatpush1.bf16.msra.mxu0 0
    %863 = vmatprep.subr.bf16.mxu0 0
    %864 = vmatpush1.bf16.msra.mxu0 0
    %865 = vmatprep.subr.bf16.mxu0 0
    %866 = vmatpush1.bf16.msra.mxu0 0
    %867 = vmatprep.subr.bf16.mxu0 0
    %868 = vmatpush1.bf16.msra.mxu0 0
    %869 = vmatprep.subr.bf16.mxu0 0
    %870 = vmatpush1.bf16.msra.mxu0 0
    %871 = vmatprep.subr.bf16.mxu0 0
    %872 = vmatpush1.bf16.msra.mxu0 0
    %873 = vmatprep.subr.bf16.mxu0 0
    %874 = vmatpush1.bf16.msra.mxu0 0
    %875 = vmatprep.subr.bf16.mxu0 0
    %876 = vmatpush1.bf16.msra.mxu0 0
    %877 = vmatprep.subr.bf16.mxu0 0
    %878 = vmatpush1.bf16.msra.mxu0 0
    %879 = vmatprep.mubr.bf16.mxu0 0
    %880 = vmatmul.mubr.bf16.gmra.mrb[0].mxu0 %v683
    %v881 = vpop.f32.mrb[0].mxu0
    %v882 = vadd.f32 %v654, %v881
    %v883 = vpop.f32.mrb[0].mxu0
    %v884 = vadd.f32 %v654, %v883
    %v885 = vpop.f32.mrb[0].mxu0
    %v886 = vadd.f32 %v659, %v885
    %v887 = vpop.f32.mrb[0].mxu0
    %v888 = vadd.f32 %v659, %v887
    %889 = vmatprep.mubr.bf16.mxu0 0
    %890 = vmatmul.mubr.bf16.gmra.mrb[0].mxu0 %v686
    %v891 = vpop.f32.mrb[0].mxu0
    %v892 = vadd.f32 %v664, %v891
    %v893 = vpop.f32.mrb[0].mxu0
    %v894 = vadd.f32 %v664, %v893
    %v895 = vpop.f32.mrb[0].mxu0
    %v896 = vadd.f32 %v669, %v895
    %v897 = vpop.f32.mrb[0].mxu0
    %v898 = vadd.f32 %v669, %v897
    %899 = vdwg.mxu0
    %900 = vmatprep.subr.bf16.mxu0 %v628
    %901 = vmatpush1.bf16.msra.mxu0 %v627
    %902 = vmatprep.subr.bf16.mxu0 %v640
    %903 = vmatpush1.bf16.msra.mxu0 %v639
    %904 = vmatprep.subr.bf16.mxu0 0
    %905 = vmatpush1.bf16.msra.mxu0 0
    %906 = vmatprep.subr.bf16.mxu0 0
    %907 = vmatpush1.bf16.msra.mxu0 0
    %908 = vmatprep.subr.bf16.mxu0 0
    %909 = vmatpush1.bf16.msra.mxu0 0
    %910 = vmatprep.subr.bf16.mxu0 0
    %911 = vmatpush1.bf16.msra.mxu0 0
    %912 = vmatprep.subr.bf16.mxu0 0
    %913 = vmatpush1.bf16.msra.mxu0 0
    %914 = vmatprep.subr.bf16.mxu0 0
    %915 = vmatpush1.bf16.msra.mxu0 0
    %916 = vmatprep.subr.bf16.mxu0 0
    %917 = vmatpush1.bf16.msra.mxu0 0
    %918 = vmatprep.subr.bf16.mxu0 0
    %919 = vmatpush1.bf16.msra.mxu0 0
    %920 = vmatprep.subr.bf16.mxu0 0
    %921 = vmatpush1.bf16.msra.mxu0 0
    %922 = vmatprep.subr.bf16.mxu0 0
    %923 = vmatpush1.bf16.msra.mxu0 0
    %924 = vmatprep.subr.bf16.mxu0 0
    %925 = vmatpush1.bf16.msra.mxu0 0
    %926 = vmatprep.subr.bf16.mxu0 0
    %927 = vmatpush1.bf16.msra.mxu0 0
    %928 = vmatprep.subr.bf16.mxu0 0
    %929 = vmatpush1.bf16.msra.mxu0 0
    %930 = vmatprep.subr.bf16.mxu0 0
    %931 = vmatpush1.bf16.msra.mxu0 0
    %932 = vmatprep.mubr.bf16.mxu0 0
    %933 = vmatmul.mubr.bf16.gmra.mrb[0].mxu0 %v683
    %v934 = vpop.f32.mrb[0].mxu0
    %v935 = vadd.f32 %v654, %v934
    %v936 = vpop.f32.mrb[0].mxu0
    %v937 = vadd.f32 %v654, %v936
    %v938 = vpop.f32.mrb[0].mxu0
    %v939 = vadd.f32 %v659, %v938
    %v940 = vpop.f32.mrb[0].mxu0
    %v941 = vadd.f32 %v659, %v940
    %942 = vmatprep.mubr.bf16.mxu0 0
    %943 = vmatmul.mubr.bf16.gmra.mrb[0].mxu0 %v686
    %v944 = vpop.f32.mrb[0].mxu0
    %v945 = vadd.f32 %v664, %v944
    %v946 = vpop.f32.mrb[0].mxu0
    %v947 = vadd.f32 %v664, %v946
    %v948 = vpop.f32.mrb[0].mxu0
    %v949 = vadd.f32 %v669, %v948
    %v950 = vpop.f32.mrb[0].mxu0
    %v951 = vadd.f32 %v669, %v950
    %952 = vdwg.mxu0
    %953 = vmatprep.subr.bf16.mxu0 %v630
    %954 = vmatpush1.bf16.msra.mxu0 %v629
    %955 = vmatprep.subr.bf16.mxu0 %v642
    %956 = vmatpush1.bf16.msra.mxu0 %v641
    %957 = vmatprep.subr.bf16.mxu0 0
    %958 = vmatpush1.bf16.msra.mxu0 0
    %959 = vmatprep.subr.bf16.mxu0 0
    %960 = vmatpush1.bf16.msra.mxu0 0
    %961 = vmatprep.subr.bf16.mxu0 0
    %962 = vmatpush1.bf16.msra.mxu0 0
    %963 = vmatprep.subr.bf16.mxu0 0
    %964 = vmatpush1.bf16.msra.mxu0 0
    %965 = vmatprep.subr.bf16.mxu0 0
    %966 = vmatpush1.bf16.msra.mxu0 0
    %967 = vmatprep.subr.bf16.mxu0 0
    %968 = vmatpush1.bf16.msra.mxu0 0
    %969 = vmatprep.subr.bf16.mxu0 0
    %970 = vmatpush1.bf16.msra.mxu0 0
    %971 = vmatprep.subr.bf16.mxu0 0
    %972 = vmatpush1.bf16.msra.mxu0 0
    %973 = vmatprep.subr.bf16.mxu0 0
    %974 = vmatpush1.bf16.msra.mxu0 0
    %975 = vmatprep.subr.bf16.mxu0 0
    %976 = vmatpush1.bf16.msra.mxu0 0
    %977 = vmatprep.subr.bf16.mxu0 0
    %978 = vmatpush1.bf16.msra.mxu0 0
    %979 = vmatprep.subr.bf16.mxu0 0
    %980 = vmatpush1.bf16.msra.mxu0 0
    %981 = vmatprep.subr.bf16.mxu0 0
    %982 = vmatpush1.bf16.msra.mxu0 0
    %983 = vmatprep.subr.bf16.mxu0 0
    %984 = vmatpush1.bf16.msra.mxu0 0
    %985 = vmatprep.mubr.bf16.mxu0 0
    %986 = vmatmul.mubr.bf16.gmra.mrb[0].mxu0 %v683
    %v987 = vpop.f32.mrb[0].mxu0
    %v988 = vadd.f32 %v654, %v987
    %v989 = vpop.f32.mrb[0].mxu0
    %v990 = vadd.f32 %v654, %v989
    %v991 = vpop.f32.mrb[0].mxu0
    %v992 = vadd.f32 %v659, %v991
    %v993 = vpop.f32.mrb[0].mxu0
    %v994 = vadd.f32 %v659, %v993
    %995 = vmatprep.mubr.bf16.mxu0 0
    %996 = vmatmul.mubr.bf16.gmra.mrb[0].mxu0 %v686
    %v997 = vpop.f32.mrb[0].mxu0
    %v998 = vadd.f32 %v664, %v997
    %v999 = vpop.f32.mrb[0].mxu0
    %v1000 = vadd.f32 %v664, %v999
    %v1001 = vpop.f32.mrb[0].mxu0
    %v1002 = vadd.f32 %v669, %v1001
    %v1003 = vpop.f32.mrb[0].mxu0
    %v1004 = vadd.f32 %v669, %v1003
    %1005 = vdwg.mxu0
    %v1006 = vmax.f32 %v723, 0.0
    %v1007 = vmax.f32 %v725, 0.0
    %v1008 = vmax.f32 %v776, 0.0
    %v1009 = vmax.f32 %v778, 0.0
    %v1010 = vmax.f32 %v829, 0.0
    %v1011 = vmax.f32 %v831, 0.0
    %v1012 = vmax.f32 %v882, 0.0
    %v1013 = vmax.f32 %v884, 0.0
    %v1014 = vmax.f32 %v935, 0.0
    %v1015 = vmax.f32 %v937, 0.0
    %v1016 = vmax.f32 %v988, 0.0
    %v1017 = vmax.f32 %v990, 0.0
    %v1018 = vmax.f32 %v727, 0.0
    %v1019 = vmax.f32 %v729, 0.0
    %v1020 = vmax.f32 %v780, 0.0
    %v1021 = vmax.f32 %v782, 0.0
    %v1022 = vmax.f32 %v833, 0.0
    %v1023 = vmax.f32 %v835, 0.0
    %v1024 = vmax.f32 %v886, 0.0
    %v1025 = vmax.f32 %v888, 0.0
    %v1026 = vmax.f32 %v939, 0.0
    %v1027 = vmax.f32 %v941, 0.0
    %v1028 = vmax.f32 %v992, 0.0
    %v1029 = vmax.f32 %v994, 0.0
    %v1030 = vmax.f32 %v733, 0.0
    %v1031 = vmax.f32 %v735, 0.0
    %v1032 = vmax.f32 %v786, 0.0
    %v1033 = vmax.f32 %v788, 0.0
    %v1034 = vmax.f32 %v839, 0.0
    %v1035 = vmax.f32 %v841, 0.0
    %v1036 = vmax.f32 %v892, 0.0
    %v1037 = vmax.f32 %v894, 0.0
    %v1038 = vmax.f32 %v945, 0.0
    %v1039 = vmax.f32 %v947, 0.0
    %v1040 = vmax.f32 %v998, 0.0
    %v1041 = vmax.f32 %v1000, 0.0
    %v1042 = vmax.f32 %v737, 0.0
    %v1043 = vmax.f32 %v739, 0.0
    %v1044 = vmax.f32 %v790, 0.0
    %v1045 = vmax.f32 %v792, 0.0
    %v1046 = vmax.f32 %v843, 0.0
    %v1047 = vmax.f32 %v845, 0.0
    %v1048 = vmax.f32 %v896, 0.0
    %v1049 = vmax.f32 %v898, 0.0
    %v1050 = vmax.f32 %v949, 0.0
    %v1051 = vmax.f32 %v951, 0.0
    %v1052 = vmax.f32 %v1002, 0.0
    %v1053 = vmax.f32 %v1004, 0.0
    %v1054 = vld [vmem:[%s7] sm:$0xff]
    %v1055 = vld [vmem:[%s7 + $0x8] sm:$0xff]
    %v1056 = vld [vmem:[%s7 + $0x10] sm:$0xff]
    %v1057 = vld [vmem:[%s7 + $0x18] sm:$0xff]
    %1059 = vset.pattern.permute.xlu0 0
    %1060 = vperm.xlu0 %1059, %v1054
    %v1061 = vpop.permute.xlu0 %1060
    %1064 = vset.pattern.permute.xlu0 0
    %1065 = vperm.xlu0 %1064, %v1055
    %v1066 = vpop.permute.xlu0 %1065
    %1069 = vset.pattern.permute.xlu0 0
    %1070 = vperm.xlu0 %1069, %v1056
    %v1071 = vpop.permute.xlu0 %1070
    %1074 = vset.pattern.permute.xlu0 0
    %1075 = vperm.xlu0 %1074, %v1057
    %v1076 = vpop.permute.xlu0 %1075
    %v1078 = vmul.f32 %v1006, %v1061
    %v1079 = vmul.f32 %v1007, %v1061
    %v1080 = vmul.f32 %v1008, %v1061
    %v1081 = vmul.f32 %v1009, %v1061
    %v1082 = vmul.f32 %v1010, %v1061
    %v1083 = vmul.f32 %v1011, %v1061
    %v1084 = vmul.f32 %v1012, %v1061
    %v1085 = vmul.f32 %v1013, %v1061
    %v1086 = vmul.f32 %v1014, %v1061
    %v1087 = vmul.f32 %v1015, %v1061
    %v1088 = vmul.f32 %v1016, %v1061
    %v1089 = vmul.f32 %v1017, %v1061
    %v1090 = vmul.f32 %v1018, %v1066
    %v1091 = vmul.f32 %v1019, %v1066
    %v1092 = vmul.f32 %v1020, %v1066
    %v1093 = vmul.f32 %v1021, %v1066
    %v1094 = vmul.f32 %v1022, %v1066
    %v1095 = vmul.f32 %v1023, %v1066
    %v1096 = vmul.f32 %v1024, %v1066
    %v1097 = vmul.f32 %v1025, %v1066
    %v1098 = vmul.f32 %v1026, %v1066
    %v1099 = vmul.f32 %v1027, %v1066
    %v1100 = vmul.f32 %v1028, %v1066
    %v1101 = vmul.f32 %v1029, %v1066
    %v1102 = vmul.f32 %v1030, %v1071
    %v1103 = vmul.f32 %v1031, %v1071
    %v1104 = vmul.f32 %v1032, %v1071
    %v1105 = vmul.f32 %v1033, %v1071
    %v1106 = vmul.f32 %v1034, %v1071
    %v1107 = vmul.f32 %v1035, %v1071
    %v1108 = vmul.f32 %v1036, %v1071
    %v1109 = vmul.f32 %v1037, %v1071
    %v1110 = vmul.f32 %v1038, %v1071
    %v1111 = vmul.f32 %v1039, %v1071
    %v1112 = vmul.f32 %v1040, %v1071
    %v1113 = vmul.f32 %v1041, %v1071
    %v1114 = vmul.f32 %v1042, %v1076
    %v1115 = vmul.f32 %v1043, %v1076
    %v1116 = vmul.f32 %v1044, %v1076
    %v1117 = vmul.f32 %v1045, %v1076
    %v1118 = vmul.f32 %v1046, %v1076
    %v1119 = vmul.f32 %v1047, %v1076
    %v1120 = vmul.f32 %v1048, %v1076
    %v1121 = vmul.f32 %v1049, %v1076
    %v1122 = vmul.f32 %v1050, %v1076
    %v1123 = vmul.f32 %v1051, %v1076
    %v1124 = vmul.f32 %v1052, %v1076
    %v1125 = vmul.f32 %v1053, %v1076
    %v1126 = vadd.f32 %v1078, %v1090
    %v1127 = vadd.f32 %v1126, %v1102
    %v1128 = vadd.f32 %v1127, %v1114
    %v1129 = vrot.slane %v1128, 4
    %v1130 = vadd.f32 %v1128, %v1129
    %v1131 = vrot.slane %v1130, 2
    %v1132 = vadd.f32 %v1130, %v1131
    %v1133 = vrot.slane %v1132, 1
    %v1134 = vadd.f32 %v1132, %v1133
    %v1135 = vadd.f32 %v1079, %v1091
    %v1136 = vadd.f32 %v1135, %v1103
    %v1137 = vadd.f32 %v1136, %v1115
    %v1138 = vrot.slane %v1137, 4
    %v1139 = vadd.f32 %v1137, %v1138
    %v1140 = vrot.slane %v1139, 2
    %v1141 = vadd.f32 %v1139, %v1140
    %v1142 = vrot.slane %v1141, 1
    %v1143 = vadd.f32 %v1141, %v1142
    %v1144 = vadd.f32 %v1080, %v1092
    %v1145 = vadd.f32 %v1144, %v1104
    %v1146 = vadd.f32 %v1145, %v1116
    %v1147 = vrot.slane %v1146, 4
    %v1148 = vadd.f32 %v1146, %v1147
    %v1149 = vrot.slane %v1148, 2
    %v1150 = vadd.f32 %v1148, %v1149
    %v1151 = vrot.slane %v1150, 1
    %v1152 = vadd.f32 %v1150, %v1151
    %v1153 = vadd.f32 %v1081, %v1093
    %v1154 = vadd.f32 %v1153, %v1105
    %v1155 = vadd.f32 %v1154, %v1117
    %v1156 = vrot.slane %v1155, 4
    %v1157 = vadd.f32 %v1155, %v1156
    %v1158 = vrot.slane %v1157, 2
    %v1159 = vadd.f32 %v1157, %v1158
    %v1160 = vrot.slane %v1159, 1
    %v1161 = vadd.f32 %v1159, %v1160
    %v1162 = vadd.f32 %v1082, %v1094
    %v1163 = vadd.f32 %v1162, %v1106
    %v1164 = vadd.f32 %v1163, %v1118
    %v1165 = vrot.slane %v1164, 4
    %v1166 = vadd.f32 %v1164, %v1165
    %v1167 = vrot.slane %v1166, 2
    %v1168 = vadd.f32 %v1166, %v1167
    %v1169 = vrot.slane %v1168, 1
    %v1170 = vadd.f32 %v1168, %v1169
    %v1171 = vadd.f32 %v1083, %v1095
    %v1172 = vadd.f32 %v1171, %v1107
    %v1173 = vadd.f32 %v1172, %v1119
    %v1174 = vrot.slane %v1173, 4
    %v1175 = vadd.f32 %v1173, %v1174
    %v1176 = vrot.slane %v1175, 2
    %v1177 = vadd.f32 %v1175, %v1176
    %v1178 = vrot.slane %v1177, 1
    %v1179 = vadd.f32 %v1177, %v1178
    %v1180 = vadd.f32 %v1084, %v1096
    %v1181 = vadd.f32 %v1180, %v1108
    %v1182 = vadd.f32 %v1181, %v1120
    %v1183 = vrot.slane %v1182, 4
    %v1184 = vadd.f32 %v1182, %v1183
    %v1185 = vrot.slane %v1184, 2
    %v1186 = vadd.f32 %v1184, %v1185
    %v1187 = vrot.slane %v1186, 1
    %v1188 = vadd.f32 %v1186, %v1187
    %v1189 = vadd.f32 %v1085, %v1097
    %v1190 = vadd.f32 %v1189, %v1109
    %v1191 = vadd.f32 %v1190, %v1121
    %v1192 = vrot.slane %v1191, 4
    %v1193 = vadd.f32 %v1191, %v1192
    %v1194 = vrot.slane %v1193, 2
    %v1195 = vadd.f32 %v1193, %v1194
    %v1196 = vrot.slane %v1195, 1
    %v1197 = vadd.f32 %v1195, %v1196
    %v1198 = vadd.f32 %v1086, %v1098
    %v1199 = vadd.f32 %v1198, %v1110
    %v1200 = vadd.f32 %v1199, %v1122
    %v1201 = vrot.slane %v1200, 4
    %v1202 = vadd.f32 %v1200, %v1201
    %v1203 = vrot.slane %v1202, 2
    %v1204 = vadd.f32 %v1202, %v1203
    %v1205 = vrot.slane %v1204, 1
    %v1206 = vadd.f32 %v1204, %v1205
    %v1207 = vadd.f32 %v1087, %v1099
    %v1208 = vadd.f32 %v1207, %v1111
    %v1209 = vadd.f32 %v1208, %v1123
    %v1210 = vrot.slane %v1209, 4
    %v1211 = vadd.f32 %v1209, %v1210
    %v1212 = vrot.slane %v1211, 2
    %v1213 = vadd.f32 %v1211, %v1212
    %v1214 = vrot.slane %v1213, 1
    %v1215 = vadd.f32 %v1213, %v1214
    %v1216 = vadd.f32 %v1088, %v1100
    %v1217 = vadd.f32 %v1216, %v1112
    %v1218 = vadd.f32 %v1217, %v1124
    %v1219 = vrot.slane %v1218, 4
    %v1220 = vadd.f32 %v1218, %v1219
    %v1221 = vrot.slane %v1220, 2
    %v1222 = vadd.f32 %v1220, %v1221
    %v1223 = vrot.slane %v1222, 1
    %v1224 = vadd.f32 %v1222, %v1223
    %v1225 = vadd.f32 %v1089, %v1101
    %v1226 = vadd.f32 %v1225, %v1113
    %v1227 = vadd.f32 %v1226, %v1125
    %v1228 = vrot.slane %v1227, 4
    %v1229 = vadd.f32 %v1227, %v1228
    %v1230 = vrot.slane %v1229, 2
    %v1231 = vadd.f32 %v1229, %v1230
    %v1232 = vrot.slane %v1231, 1
    %v1233 = vadd.f32 %v1231, %v1232
    %v1234 = vld [vmem:[#allocation2] sm:$0x1]
    %1236 = vset.pattern.permute.xlu0 0
    %1237 = vperm.xlu0 %1236, %v1234
    %v1238 = vpop.permute.xlu0 %1237
    %v1240 = vlaneseq
    %v1241 = vshrl.u32 %v1240, 7
    %v1242 = vsub.s32 0, %v1241
    %v1243 = vrot.slane %v1238, %v1242
    %v1244 = vadd.f32 %v1134, %v1243
    %v1245 = vadd.f32 %v1143, %v1243
    %v1246 = vadd.f32 %v1152, %v1243
    %v1247 = vadd.f32 %v1161, %v1243
    %v1248 = vadd.f32 %v1170, %v1243
    %v1249 = vadd.f32 %v1179, %v1243
    %v1250 = vadd.f32 %v1188, %v1243
    %v1251 = vadd.f32 %v1197, %v1243
    %v1252 = vadd.f32 %v1206, %v1243
    %v1253 = vadd.f32 %v1215, %v1243
    %v1254 = vadd.f32 %v1224, %v1243
    %v1255 = vadd.f32 %v1233, %v1243
    %v1256 = vmax.f32 %v1244, %v1246
    %v1257 = vmax.f32 %v1245, %v1247
    %v1258 = vmax.f32 %v1256, %v1248
    %v1259 = vmax.f32 %v1257, %v1249
    %v1260 = vsub.f32 %v1244, %v1258
    %v1261 = vsub.f32 %v1245, %v1259
    %v1262 = vmul.f32 %v1260, 1.442695
    %v1263 = vpow.pop %v1262
    %v1264 = vmul.f32 %v1261, 1.442695
    %v1265 = vpow.pop %v1264
    %v1266 = vsub.f32 %v1246, %v1258
    %v1267 = vsub.f32 %v1247, %v1259
    %v1268 = vmul.f32 %v1266, 1.442695
    %v1269 = vpow.pop %v1268
    %v1270 = vmul.f32 %v1267, 1.442695
    %v1271 = vpow.pop %v1270
    %v1272 = vadd.f32 %v1263, %v1269
    %v1273 = vadd.f32 %v1265, %v1271
    %v1274 = vsub.f32 %v1248, %v1258
    %v1275 = vsub.f32 %v1249, %v1259
    %v1276 = vmul.f32 %v1274, 1.442695
    %v1277 = vpow.pop %v1276
    %v1278 = vmul.f32 %v1275, 1.442695
    %v1279 = vpow.pop %v1278
    %v1280 = vadd.f32 %v1272, %v1277
    %v1281 = vadd.f32 %v1273, %v1279
    %v1282 = vlog2.pop %v1280
    %v1283 = vmul.f32 %v1282, 0.6931472
    %v1284 = vlog2.pop %v1281
    %v1285 = vmul.f32 %v1284, 0.6931472
    %v1286 = vadd.f32 %v1258, %v1283
    %v1287 = vadd.f32 %v1259, %v1285
    %v1288 = vadd.f32 %v1286, -0.4054651
    %v1289 = vadd.f32 %v1287, -0.4054651
    %v1290 = vmax.f32 %v1250, %v1252
    %v1291 = vmax.f32 %v1251, %v1253
    %v1292 = vmax.f32 %v1290, %v1254
    %v1293 = vmax.f32 %v1291, %v1255
    %v1294 = vsub.f32 %v1250, %v1292
    %v1295 = vsub.f32 %v1251, %v1293
    %v1296 = vmul.f32 %v1294, 1.442695
    %v1297 = vpow.pop %v1296
    %v1298 = vmul.f32 %v1295, 1.442695
    %v1299 = vpow.pop %v1298
    %v1300 = vsub.f32 %v1252, %v1292
    %v1301 = vsub.f32 %v1253, %v1293
    %v1302 = vmul.f32 %v1300, 1.442695
    %v1303 = vpow.pop %v1302
    %v1304 = vmul.f32 %v1301, 1.442695
    %v1305 = vpow.pop %v1304
    %v1306 = vadd.f32 %v1297, %v1303
    %v1307 = vadd.f32 %v1299, %v1305
    %v1308 = vsub.f32 %v1254, %v1292
    %v1309 = vsub.f32 %v1255, %v1293
    %v1310 = vmul.f32 %v1308, 1.442695
    %v1311 = vpow.pop %v1310
    %v1312 = vmul.f32 %v1309, 1.442695
    %v1313 = vpow.pop %v1312
    %v1314 = vadd.f32 %v1306, %v1311
    %v1315 = vadd.f32 %v1307, %v1313
    %v1316 = vlog2.pop %v1314
    %v1317 = vmul.f32 %v1316, 0.6931472
    %v1318 = vlog2.pop %v1315
    %v1319 = vmul.f32 %v1318, 0.6931472
    %v1320 = vadd.f32 %v1292, %v1317
    %v1321 = vadd.f32 %v1293, %v1319
    %v1322 = vadd.f32 %v1320, -0.4054651
    %v1323 = vadd.f32 %v1321, -0.4054651
    %v1324 = vand.u32 2147483647, %v1288
    %v1325 = vand.u32 2147483647, %v1289
    %v1326 = vsub.f32 0.0, %v1324
    %v1327 = vsub.f32 0.0, %v1325
    %v1328 = vmul.f32 %v1326, 1.442695
    %v1329 = vpow.pop %v1328
    %v1330 = vmul.f32 %v1327, 1.442695
    %v1331 = vpow.pop %v1330
    %v1332 = vadd.f32 %v1329, 1.0
    %v1333 = vlog2.pop %v1332
    %v1334 = vmul.f32 %v1333, 0.6931472
    %v1335 = vmul.f32 -0.5, %v1329
    %v1336 = vadd.f32 %v1335, 1.0
    %v1337 = vmul.f32 %v1336, %v1329
    %v1338 = vand.u32 2147483647, %v1329
    %vm1339 = vcmp.lt.f32.partialorder %v1338, 0.0004427343
    %v1340 = vsel %vm1339, %v1337, %v1334
    %v1341 = vadd.f32 %v1331, 1.0
    %v1342 = vlog2.pop %v1341
    %v1343 = vmul.f32 %v1342, 0.6931472
    %v1344 = vmul.f32 -0.5, %v1331
    %v1345 = vadd.f32 %v1344, 1.0
    %v1346 = vmul.f32 %v1345, %v1331
    %v1347 = vand.u32 2147483647, %v1331
    %vm1348 = vcmp.lt.f32.partialorder %v1347, 0.0004427343
    %v1349 = vsel %vm1348, %v1346, %v1343
    %v1350 = vmin.f32 %v1288, 0.0
    %v1351 = vmin.f32 %v1289, 0.0
    %v1352 = vsub.f32 %v1340, %v1350
    %v1353 = vsub.f32 %v1349, %v1351
    %v1354 = vmul.f32 %v1352, %v47
    %v1355 = vmul.f32 %v1353, %v48
    %v1358 = vcombine.low %v1354, %v1355
    %v1360 = vunpack.c.l.s4 1966171168
    %v1361 = vunpack.c.0.s8 %v1360
    %v1362 = vlaneseq
    %v1363 = vshrl.u32 %v1362, 7
    %v1364 = vsub.s32 %v1361, %v1363
    %v1365 = vrot.slane %v1358, %v1364
    %v1367 = vunpack.c.l.s4 1966171168
    %v1368 = vunpack.c.0.s8 %v1367
    %v1369 = vlaneseq
    %v1370 = vshrl.u32 %v1369, 7
    %v1371 = vsub.s32 %v1368, %v1370
    %v1372 = vrot.slane %v1365, %v1371
    %v1374 = vlaneseq
    %vm1375 = vcmp.ge.s32.totalorder %v1374, 0
    %vm1376 = vcmp.lt.s32.totalorder %v1374, 256
    %vm1377 = vmand %vm1375, %vm1376
    %1378 = vst.msk [vmem:[#allocation3] ss:$2 sm:$0x3] %vm1377, %v1372
    %v1379 = vsub.f32 0.0, %v1322
    %v1380 = vsub.f32 0.0, %v1323
    %v1381 = vand.u32 2147483647, %v1379
    %v1382 = vand.u32 2147483647, %v1380
    %v1383 = vsub.f32 0.0, %v1381
    %v1384 = vsub.f32 0.0, %v1382
    %v1385 = vmul.f32 %v1383, 1.442695
    %v1386 = vpow.pop %v1385
    %v1387 = vmul.f32 %v1384, 1.442695
    %v1388 = vpow.pop %v1387
    %v1389 = vadd.f32 %v1386, 1.0
    %v1390 = vlog2.pop %v1389
    %v1391 = vmul.f32 %v1390, 0.6931472
    %v1392 = vmul.f32 -0.5, %v1386
    %v1393 = vadd.f32 %v1392, 1.0
    %v1394 = vmul.f32 %v1393, %v1386
    %v1395 = vand.u32 2147483647, %v1386
    %vm1396 = vcmp.lt.f32.partialorder %v1395, 0.0004427343
    %v1397 = vsel %vm1396, %v1394, %v1391
    %v1398 = vadd.f32 %v1388, 1.0
    %v1399 = vlog2.pop %v1398
    %v1400 = vmul.f32 %v1399, 0.6931472
    %v1401 = vmul.f32 -0.5, %v1388
    %v1402 = vadd.f32 %v1401, 1.0
    %v1403 = vmul.f32 %v1402, %v1388
    %v1404 = vand.u32 2147483647, %v1388
    %vm1405 = vcmp.lt.f32.partialorder %v1404, 0.0004427343
    %v1406 = vsel %vm1405, %v1403, %v1400
    %v1407 = vmin.f32 %v1379, 0.0
    %v1408 = vmin.f32 %v1380, 0.0
    %v1409 = vsub.f32 %v1397, %v1407
    %v1410 = vsub.f32 %v1406, %v1408
    %v1411 = vmul.f32 %v1409, %v47
    %v1412 = vmul.f32 %v1410, %v48
    %v1415 = vcombine.low %v1411, %v1412
    %v1417 = vunpack.c.l.s4 1966171168
    %v1418 = vunpack.c.0.s8 %v1417
    %v1419 = vlaneseq
    %v1420 = vshrl.u32 %v1419, 7
    %v1421 = vsub.s32 %v1418, %v1420
    %v1422 = vrot.slane %v1415, %v1421
    %v1424 = vunpack.c.l.s4 1966171168
    %v1425 = vunpack.c.0.s8 %v1424
    %v1426 = vlaneseq
    %v1427 = vshrl.u32 %v1426, 7
    %v1428 = vsub.s32 %v1425, %v1427
    %v1429 = vrot.slane %v1422, %v1428
    %s1431 = scalar_lea.vmem [#allocation3], 1
    %1432 = vst.msk [vmem:[%s1431] ss:$2 sm:$0x3] %vm1377, %v1429
    // Predicated region
    $region38: #{tpu_custom_call.1} parent=1 // pred_check
      _
    $region39: #{tpu_custom_call.1} parent=1 // pred_check_branch
      %1434 = sbr.rel (0) target = $region41
    $region40: #{tpu_custom_call.1} parent=1 // pred_region
      %s1436 = ssub.s32 64, 64
      %1437 = vsyncadd [#allocation4], %s1436
      %s1439 = sshll.u32 [#allocation3], 4
      %s1440 = int_to_ptr.vmem [resolvable:$true] %s1439
      %1442 = dma.vmem_to_hbm [thread:$0]  %s1440, 64, %s9, [#allocation4]
    $region41: #{tpu_custom_call.1} parent=1 // pred_fallthru
      _
    // Predicated region
    $region42: #{tpu_custom_call.1} parent=1 // pred_check
      _
    $region43: #{tpu_custom_call.1} parent=1 // pred_check_branch
      %1444 = sbr.rel (0) target = $region45
    $region44: #{tpu_custom_call.1} parent=1 // pred_region
      %1445 = dma.done [#allocation4], 64
    $region45: #{tpu_custom_call.1} parent=1 // pred_fallthru
      _
    %1446 = vsyncpa [#allocation4], 1

</llo_original>
